<compile_context>
chip_gen: v6e
topology: v6e:2x2x1
jax: 0.10.0
libtpu: 0.0.40
codegen_flags: <defaults>
</compile_context>

<pallas_src>
import functools
import math

import jax
import jax.numpy as jnp
from jax.experimental import pallas as pl
from jax.experimental.pallas import tpu as pltpu


# ------------------------------ model config --------------------------------

CFG = dict(
    vocab_size=128,
    hidden=32,
    num_heads=2,
    head_dim=16,
    num_layers=2,
    intermediate=64,
    max_pos=64,
    type_vocab=1,
    pad_token_id=1,
    ln_eps=1e-5,
)

# Packed small-parameter slab row layout (see init_params):
#   row 0: emb_ln_gamma   row 1: emb_ln_beta
#   row 2: classifier w   row 3: classifier b
#   per layer l, base = 4 + 10*l:
#     +0 q_bias(scaled) +1 k_bias +2 v_bias +3 o_bias
#     +4 attn_ln_gamma  +5 attn_ln_beta
#     +6 ffn_b1         +7 ffn_b2
#     +8 ffn_ln_gamma   +9 ffn_ln_beta
_ROWS_PER_LAYER = 10
_GLOBAL_ROWS = 4


# ------------------------------ Pallas kernel --------------------------------

def _fused_codebert_kernel(
    emb_ref, rowid_ref, colcode_ref, pvec_ref, attnw_ref, ffnw_ref, out_ref,
    *, num_layers, num_heads, head_dim, d_model, intermediate, batch, seq, eps,
):
    f32 = jnp.float32
    bf16 = jnp.bfloat16
    D, I = d_model, intermediate

    pv = pvec_ref[...]                       # (4 + 10L, 128) f32, lives in vregs

    def prow(r, w):
        return pv[r:r + 1, 0:w]

    def layer_norm(x, g, b):
        mean = jnp.mean(x, axis=-1, keepdims=True)
        cent = x - mean
        var = jnp.mean(cent * cent, axis=-1, keepdims=True)
        return cent * jax.lax.rsqrt(var + eps) * g + b

    # --- embedding LayerNorm (dropout = identity at inference) ---
    h = layer_norm(emb_ref[...], prow(0, D), prow(1, D))

    # (BS, BS) additive attention bias built in-kernel from two O(BS) vectors:
    # colcode[j] = batch_id(j) if key j is un-padded else -1; rowid[i] =
    # batch_id(i).  Equal  <=>  same sequence AND key valid.  No O(BS^2) HBM
    # array is ever materialized.
    bias = jnp.where(rowid_ref[...] == colcode_ref[...], 0.0, -1e9)

    gelu_c = math.sqrt(2.0 / math.pi)

    for l in range(num_layers):
        base = _GLOBAL_ROWS + l * _ROWS_PER_LAYER

        # --------------------------- self-attention --------------------------
        h_bf = h.astype(bf16)
        attn_out = None
        for hh in range(num_heads):
            lo, hi = hh * head_dim, (hh + 1) * head_dim
            # Per-head weights are leading-axis slices of the weight ref
            # (natural (D, head_dim) orientation) -> the activation is never
            # lane-sliced, no relayout before the MXU ops.
            q_h = jnp.dot(h_bf, attnw_ref[l, 0, hh],
                          preferred_element_type=f32) + pv[base:base + 1, lo:hi]
            k_h = jnp.dot(h_bf, attnw_ref[l, 1, hh],
                          preferred_element_type=f32) + pv[base + 1:base + 2, lo:hi]
            v_h = jnp.dot(h_bf, attnw_ref[l, 2, hh],
                          preferred_element_type=f32) + pv[base + 2:base + 3, lo:hi]

            # 1/sqrt(head_dim) is pre-folded into the Q weights and bias.
            scores = jax.lax.dot_general(
                q_h.astype(bf16), k_h.astype(bf16), (((1,), (1,)), ((), ())),
                preferred_element_type=f32) + bias
            m = jnp.max(scores, axis=-1, keepdims=True)
            p = jnp.exp(scores - m)
            p = p / jnp.sum(p, axis=-1, keepdims=True)     # exact softmax
            ctx = jnp.dot(p.astype(bf16), v_h.astype(bf16),
                          preferred_element_type=f32)

            # attnw[l, 3, hh] holds Wo[rows_of_head].T (shape (D, hd)), so
            # contracting the last dims and accumulating over heads is exactly
            # concat(heads) @ Wo.
            part = jax.lax.dot_general(
                ctx.astype(bf16), attnw_ref[l, 3, hh], (((1,), (1,)), ((), ())),
                preferred_element_type=f32)
            attn_out = part if attn_out is None else attn_out + part

        attn_out = attn_out + prow(base + 3, D)
        h = layer_norm(attn_out + h, prow(base + 4, D), prow(base + 5, D))

        # ----------------------------- feed-forward --------------------------
        h_bf = h.astype(bf16)
        inter = jnp.dot(h_bf, ffnw_ref[l, 0],
                        preferred_element_type=f32) + prow(base + 6, I)
        # TODO(synk): exact erf-GELU once lax.erf lowers in Mosaic; the tanh
        # approximation ("gelu_new") is used here (|diff| ~ 1e-3 per activation).
        inter = 0.5 * inter * (
            1.0 + jnp.tanh(gelu_c * (inter + 0.044715 * inter * inter * inter)))
        # ffnw[l, 1] stores W2^T -> contract the last dims of both operands.
        ffn_out = jax.lax.dot_general(
            inter.astype(bf16), ffnw_ref[l, 1], (((1,), (1,)), ((), ())),
            preferred_element_type=f32) + prow(base + 7, D)
        h = layer_norm(ffn_out + h, prow(base + 8, D), prow(base + 9, D))

    # ------------------ classifier on the CLS rows only ----------------------
    # nn.Dropout(0.1) is identity at inference time; Linear(D, 1) on CLS.
    cls_h = jnp.concatenate(
        [h[bi * seq:bi * seq + 1, :] for bi in range(batch)], axis=0)   # (B, D)
    logit = jnp.sum(cls_h * prow(2, D), axis=-1, keepdims=True) + pv[3:4, 0:1]
    # lane-dense (B, 128) output slab: unmasked full-lane stores.
    out_ref[...] = jnp.broadcast_to(logit, out_ref.shape)


def _vmem():
    return pl.BlockSpec(memory_space=pltpu.MemorySpace.VMEM)


# ------------------------------ parameters -----------------------------------

def init_params(key):
    """Deterministic synthetic parameters, packed into the kernel layout."""
    d = CFG["hidden"]
    H = CFG["num_heads"]
    hd = CFG["head_dim"]
    i_ = CFG["intermediate"]
    L = CFG["num_layers"]
    scale = 1.0 / math.sqrt(hd)

    def nrm(k, shape):
        return 0.02 * jax.random.normal(k, shape, dtype=jnp.float32)

    keys = jax.random.split(key, 4 + 6 * L)
    ki = iter(keys)

    word_emb = nrm(next(ki), (CFG["vocab_size"], d))
    pos_emb = nrm(next(ki), (CFG["max_pos"], d))
    type_emb = nrm(next(ki), (CFG["type_vocab"], d))
    cls_w = nrm(next(ki), (d,))
    cls_b = jnp.zeros((1,), jnp.float32)

    zeros_d = jnp.zeros((d,), jnp.float32)
    ones_d = jnp.ones((d,), jnp.float32)
    zeros_i = jnp.zeros((i_,), jnp.float32)

    def pad_row(v):
        v = jnp.asarray(v, jnp.float32).reshape(-1)
        return jnp.pad(v, (0, 128 - v.shape[0]))

    pvec_rows = [pad_row(ones_d),    # emb LN gamma
                 pad_row(zeros_d),   # emb LN beta
                 pad_row(cls_w),     # classifier weight (row)
                 pad_row(cls_b)]     # classifier bias

    attn_layers, ffn_layers = [], []
    for _ in range(L):
        q_w = nrm(next(ki), (d, d)) * scale   # 1/sqrt(head_dim) folded into Q
        k_w = nrm(next(ki), (d, d))
        v_w = nrm(next(ki), (d, d))
        o_w = nrm(next(ki), (d, d))
        w1 = nrm(next(ki), (d, i_))
        w2 = nrm(next(ki), (i_, d))

        # Per-head blocks, contraction dim leading (MXU-natural):
        q_h = q_w.reshape(d, H, hd).transpose(1, 0, 2)        # (H, d, hd)
        k_h = k_w.reshape(d, H, hd).transpose(1, 0, 2)
        v_h = v_w.reshape(d, H, hd).transpose(1, 0, 2)
        o_h = o_w.reshape(H, hd, d).transpose(0, 2, 1)         # Wo[rows].T -> (H, d, hd)
        attn_layers.append(jnp.stack([q_h, k_h, v_h, o_h]))    # (4, H, d, hd)
        ffn_layers.append(jnp.stack([w1, w2.T]))               # (2, d, i_)

        pvec_rows += [
            pad_row(zeros_d),   # q bias (already scaled -- zero here)
            pad_row(zeros_d),   # k bias
            pad_row(zeros_d),   # v bias
            pad_row(zeros_d),   # attn output bias
            pad_row(ones_d),    # attn LN gamma
            pad_row(zeros_d),   # attn LN beta
            pad_row(zeros_i),   # ffn bias 1
            pad_row(zeros_d),   # ffn bias 2
            pad_row(ones_d),    # ffn LN gamma
            pad_row(zeros_d),   # ffn LN beta
        ]

    return {
        # embedding tables (gathered in XLA)
        "word_emb": word_emb,
        "pos_emb": pos_emb,
        "type_emb": type_emb,
        # packed kernel parameters
        "pvec": jnp.stack(pvec_rows),                         # (4+10L, 128) f32
        "attn_w": jnp.stack(attn_layers).astype(jnp.bfloat16),  # (L, 4, H, d, hd)
        "ffn_w": jnp.stack(ffn_layers).astype(jnp.bfloat16),    # (L, 2, d, i_)
    }


# ------------------------------ forward pass ---------------------------------

@jax.jit
def codebert_clone_detector_forward(params, input_ids, attention_mask):
    """Equivalent of CodeBERTCloneDetector.forward (eval mode: dropout = id)."""
    b, s = input_ids.shape
    d = CFG["hidden"]

    # --- embedding gathers + sum (XLA glue); LayerNorm runs in the kernel ---
    mask_i = attention_mask.astype(jnp.int32)
    # RoBERTa-style position ids: cumsum of mask offset by padding_idx.
    position_ids = jnp.cumsum(mask_i, axis=1) * mask_i + CFG["pad_token_id"]
    word_e = jnp.take(params["word_emb"], input_ids, axis=0)
    pos_e = jnp.take(params["pos_emb"], position_ids, axis=0)
    type_e = jnp.take(params["type_emb"], jnp.zeros_like(input_ids), axis=0)
    emb = (word_e + pos_e + type_e).reshape(b * s, d).astype(jnp.float32)

    # --- O(B*S) mask descriptors; the (BS, BS) bias is built in-kernel ---
    batch_ids = jnp.repeat(jnp.arange(b, dtype=jnp.float32), s)      # (BS,)
    row_ids = batch_ids.reshape(b * s, 1)                            # (BS, 1)
    col_code = jnp.where(attention_mask.reshape(-1) > 0,
                         batch_ids, -1.0).reshape(1, b * s)          # (1, BS)

    kernel = functools.partial(
        _fused_codebert_kernel,
        num_layers=CFG["num_layers"],
        num_heads=CFG["num_heads"],
        head_dim=CFG["head_dim"],
        d_model=d,
        intermediate=CFG["intermediate"],
        batch=b,
        seq=s,
        eps=CFG["ln_eps"],
    )

    out = pl.pallas_call(
        kernel,
        out_shape=jax.ShapeDtypeStruct((b, 128), jnp.float32),
        in_specs=[_vmem()] * 6,
        out_specs=_vmem(),
    )(emb, row_ids, col_code, params["pvec"], params["attn_w"], params["ffn_w"])

    # CLS logits are broadcast over the 128 lanes of a (B, 128) slab.
    return out[:, 0]


# ----------------------------------- main ------------------------------------

if __name__ == "__main__":
    key = jax.random.PRNGKey(0)
    k_param, k_ids = jax.random.split(key)

    params = init_params(k_param)

    B, S = 2, 8
    input_ids = jax.random.randint(
        k_ids, (B, S), minval=2, maxval=CFG["vocab_size"], dtype=jnp.int32
    )
    # simple mask: second example has 2 padded positions
    attention_mask = jnp.array(
        [[1] * S, [1] * (S - 2) + [0, 0]], dtype=jnp.int32
    )

    out = codebert_clone_detector_forward(params, input_ids, attention_mask)
    out = jax.block_until_ready(out)
    assert out.shape == (B,) and out.dtype == jnp.float32
    print("KERNEL_OK")
</pallas_src>

<mosaic_0001>
module attributes {stable_mosaic.version = 11 : i64} {
  func.func @_fused_codebert_kernel(%arg0: memref<16x32xf32, #tpu.memory_space<vmem>>, %arg1: memref<16x1xf32, #tpu.memory_space<vmem>>, %arg2: memref<1x16xf32, #tpu.memory_space<vmem>>, %arg3: memref<24x128xf32, #tpu.memory_space<vmem>>, %arg4: memref<2x4x2x32x16xbf16, #tpu.memory_space<vmem>>, %arg5: memref<2x2x32x64xbf16, #tpu.memory_space<vmem>>, %arg6: memref<2x128xf32, #tpu.memory_space<vmem>>) attributes {dimension_semantics = [], scalar_prefetch = 0 : i64, scratch_operands = 0 : i64, tpu.core_type = #tpu.core_type<tc>} {
    %c0 = arith.constant 0 : index
    %c0_0 = arith.constant 0 : index
    %0 = vector.load %arg3[%c0, %c0_0] : memref<24x128xf32, #tpu.memory_space<vmem>>, vector<24x128xf32>
    %c0_1 = arith.constant 0 : index
    %c0_2 = arith.constant 0 : index
    %1 = vector.load %arg0[%c0_1, %c0_2] : memref<16x32xf32, #tpu.memory_space<vmem>>, vector<16x32xf32>
    %2 = vector.extract_strided_slice %0 {offsets = [0, 0], sizes = [1, 32], strides = [1, 1]} : vector<24x128xf32> to vector<1x32xf32>
    %3 = vector.extract_strided_slice %0 {offsets = [1, 0], sizes = [1, 32], strides = [1, 1]} : vector<24x128xf32> to vector<1x32xf32>
    %cst = arith.constant dense<0.000000e+00> : vector<16xf32>
    %4 = vector.multi_reduction <add>, %1, %cst [1] : vector<16x32xf32> to vector<16xf32>
    %5 = vector.shape_cast %4 : vector<16xf32> to vector<16x1xf32>
    %cst_3 = arith.constant 3.200000e+01 : f32
    %6 = vector.broadcast %cst_3 : f32 to vector<16x1xf32>
    %7 = arith.divf %5, %6 : vector<16x1xf32>
    %8 = vector.broadcast %7 : vector<16x1xf32> to vector<16x32xf32>
    %9 = arith.subf %1, %8 : vector<16x32xf32>
    %10 = arith.mulf %9, %9 : vector<16x32xf32>
    %cst_4 = arith.constant dense<0.000000e+00> : vector<16xf32>
    %11 = vector.multi_reduction <add>, %10, %cst_4 [1] : vector<16x32xf32> to vector<16xf32>
    %12 = vector.shape_cast %11 : vector<16xf32> to vector<16x1xf32>
    %cst_5 = arith.constant 3.200000e+01 : f32
    %13 = vector.broadcast %cst_5 : f32 to vector<16x1xf32>
    %14 = arith.divf %12, %13 : vector<16x1xf32>
    %cst_6 = arith.constant 9.99999974E-6 : f32
    %15 = vector.broadcast %cst_6 : f32 to vector<16x1xf32>
    %16 = arith.addf %14, %15 : vector<16x1xf32>
    %17 = math.rsqrt %16 : vector<16x1xf32>
    %18 = vector.broadcast %17 : vector<16x1xf32> to vector<16x32xf32>
    %19 = arith.mulf %9, %18 : vector<16x32xf32>
    %20 = vector.broadcast %2 : vector<1x32xf32> to vector<16x32xf32>
    %21 = arith.mulf %19, %20 : vector<16x32xf32>
    %22 = vector.broadcast %3 : vector<1x32xf32> to vector<16x32xf32>
    %23 = arith.addf %21, %22 : vector<16x32xf32>
    %c0_7 = arith.constant 0 : index
    %c0_8 = arith.constant 0 : index
    %24 = vector.load %arg1[%c0_7, %c0_8] : memref<16x1xf32, #tpu.memory_space<vmem>>, vector<16x1xf32>
    %c0_9 = arith.constant 0 : index
    %c0_10 = arith.constant 0 : index
    %25 = vector.load %arg2[%c0_9, %c0_10] : memref<1x16xf32, #tpu.memory_space<vmem>>, vector<1x16xf32>
    %26 = vector.broadcast %24 : vector<16x1xf32> to vector<16x16xf32>
    %27 = vector.broadcast %25 : vector<1x16xf32> to vector<16x16xf32>
    %28 = arith.cmpf oeq, %26, %27 : vector<16x16xf32>
    %cst_11 = arith.constant 0.000000e+00 : f32
    %cst_12 = arith.constant -1.000000e+09 : f32
    %29 = vector.broadcast %cst_11 : f32 to vector<16x16xf32>
    %30 = vector.broadcast %cst_12 : f32 to vector<16x16xf32>
    %31 = arith.select %28, %29, %30 : vector<16x16xi1>, vector<16x16xf32>
    %32 = arith.truncf %23 : vector<16x32xf32> to vector<16x32xbf16>
    %c0_13 = arith.constant 0 : index
    %c0_14 = arith.constant 0 : index
    %c0_15 = arith.constant 0 : index
    %c0_16 = arith.constant 0 : index
    %c0_17 = arith.constant 0 : index
    %33 = vector.load %arg4[%c0_13, %c0_14, %c0_15, %c0_16, %c0_17] : memref<2x4x2x32x16xbf16, #tpu.memory_space<vmem>>, vector<1x1x1x32x16xbf16>
    %34 = vector.shape_cast %33 : vector<1x1x1x32x16xbf16> to vector<32x16xbf16>
    %cst_18 = arith.constant dense<0.000000e+00> : vector<16x16xf32>
    %35 = tpu.matmul %32, %34, %cst_18 {dimension_numbers = #tpu.dot_dimension_numbers<[1], [0], [0], [1], [0, 0, 1, 1], [], []>} : vector<16x32xbf16>, vector<32x16xbf16>, vector<16x16xf32> -> vector<16x16xf32>
    %36 = vector.extract_strided_slice %0 {offsets = [4, 0], sizes = [1, 16], strides = [1, 1]} : vector<24x128xf32> to vector<1x16xf32>
    %37 = vector.broadcast %36 : vector<1x16xf32> to vector<16x16xf32>
    %38 = arith.addf %35, %37 : vector<16x16xf32>
    %c0_19 = arith.constant 0 : index
    %c1 = arith.constant 1 : index
    %c0_20 = arith.constant 0 : index
    %c0_21 = arith.constant 0 : index
    %c0_22 = arith.constant 0 : index
    %39 = vector.load %arg4[%c0_19, %c1, %c0_20, %c0_21, %c0_22] : memref<2x4x2x32x16xbf16, #tpu.memory_space<vmem>>, vector<1x1x1x32x16xbf16>
    %40 = vector.shape_cast %39 : vector<1x1x1x32x16xbf16> to vector<32x16xbf16>
    %cst_23 = arith.constant dense<0.000000e+00> : vector<16x16xf32>
    %41 = tpu.matmul %32, %40, %cst_23 {dimension_numbers = #tpu.dot_dimension_numbers<[1], [0], [0], [1], [0, 0, 1, 1], [], []>} : vector<16x32xbf16>, vector<32x16xbf16>, vector<16x16xf32> -> vector<16x16xf32>
    %42 = vector.extract_strided_slice %0 {offsets = [5, 0], sizes = [1, 16], strides = [1, 1]} : vector<24x128xf32> to vector<1x16xf32>
    %43 = vector.broadcast %42 : vector<1x16xf32> to vector<16x16xf32>
    %44 = arith.addf %41, %43 : vector<16x16xf32>
    %c0_24 = arith.constant 0 : index
    %c2 = arith.constant 2 : index
    %c0_25 = arith.constant 0 : index
    %c0_26 = arith.constant 0 : index
    %c0_27 = arith.constant 0 : index
    %45 = vector.load %arg4[%c0_24, %c2, %c0_25, %c0_26, %c0_27] : memref<2x4x2x32x16xbf16, #tpu.memory_space<vmem>>, vector<1x1x1x32x16xbf16>
    %46 = vector.shape_cast %45 : vector<1x1x1x32x16xbf16> to vector<32x16xbf16>
    %cst_28 = arith.constant dense<0.000000e+00> : vector<16x16xf32>
    %47 = tpu.matmul %32, %46, %cst_28 {dimension_numbers = #tpu.dot_dimension_numbers<[1], [0], [0], [1], [0, 0, 1, 1], [], []>} : vector<16x32xbf16>, vector<32x16xbf16>, vector<16x16xf32> -> vector<16x16xf32>
    %48 = vector.extract_strided_slice %0 {offsets = [6, 0], sizes = [1, 16], strides = [1, 1]} : vector<24x128xf32> to vector<1x16xf32>
    %49 = vector.broadcast %48 : vector<1x16xf32> to vector<16x16xf32>
    %50 = arith.addf %47, %49 : vector<16x16xf32>
    %51 = arith.truncf %38 : vector<16x16xf32> to vector<16x16xbf16>
    %52 = arith.truncf %44 : vector<16x16xf32> to vector<16x16xbf16>
    %cst_29 = arith.constant dense<0.000000e+00> : vector<16x16xf32>
    %53 = tpu.matmul %51, %52, %cst_29 {dimension_numbers = #tpu.dot_dimension_numbers<[1], [1], [0], [0], [0, 0, 1, 0], [], []>} : vector<16x16xbf16>, vector<16x16xbf16>, vector<16x16xf32> -> vector<16x16xf32>
    %54 = arith.addf %53, %31 : vector<16x16xf32>
    %cst_30 = arith.constant dense<0xFF800000> : vector<16xf32>
    %55 = vector.multi_reduction <maximumf>, %54, %cst_30 [1] : vector<16x16xf32> to vector<16xf32>
    %56 = vector.shape_cast %55 : vector<16xf32> to vector<16x1xf32>
    %57 = vector.broadcast %56 : vector<16x1xf32> to vector<16x16xf32>
    %58 = arith.subf %54, %57 : vector<16x16xf32>
    %59 = math.exp %58 : vector<16x16xf32>
    %cst_31 = arith.constant dense<0.000000e+00> : vector<16xf32>
    %60 = vector.multi_reduction <add>, %59, %cst_31 [1] : vector<16x16xf32> to vector<16xf32>
    %61 = vector.shape_cast %60 : vector<16xf32> to vector<16x1xf32>
    %62 = vector.broadcast %61 : vector<16x1xf32> to vector<16x16xf32>
    %63 = arith.divf %59, %62 : vector<16x16xf32>
    %64 = arith.truncf %63 : vector<16x16xf32> to vector<16x16xbf16>
    %65 = arith.truncf %50 : vector<16x16xf32> to vector<16x16xbf16>
    %cst_32 = arith.constant dense<0.000000e+00> : vector<16x16xf32>
    %66 = tpu.matmul %64, %65, %cst_32 {dimension_numbers = #tpu.dot_dimension_numbers<[1], [0], [0], [1], [0, 0, 1, 1], [], []>} : vector<16x16xbf16>, vector<16x16xbf16>, vector<16x16xf32> -> vector<16x16xf32>
    %67 = arith.truncf %66 : vector<16x16xf32> to vector<16x16xbf16>
    %c0_33 = arith.constant 0 : index
    %c3 = arith.constant 3 : index
    %c0_34 = arith.constant 0 : index
    %c0_35 = arith.constant 0 : index
    %c0_36 = arith.constant 0 : index
    %68 = vector.load %arg4[%c0_33, %c3, %c0_34, %c0_35, %c0_36] : memref<2x4x2x32x16xbf16, #tpu.memory_space<vmem>>, vector<1x1x1x32x16xbf16>
    %69 = vector.shape_cast %68 : vector<1x1x1x32x16xbf16> to vector<32x16xbf16>
    %cst_37 = arith.constant dense<0.000000e+00> : vector<16x32xf32>
    %70 = tpu.matmul %67, %69, %cst_37 {dimension_numbers = #tpu.dot_dimension_numbers<[1], [1], [0], [0], [0, 0, 1, 0], [], []>} : vector<16x16xbf16>, vector<32x16xbf16>, vector<16x32xf32> -> vector<16x32xf32>
    %c0_38 = arith.constant 0 : index
    %c0_39 = arith.constant 0 : index
    %c1_40 = arith.constant 1 : index
    %c0_41 = arith.constant 0 : index
    %c0_42 = arith.constant 0 : index
    %71 = vector.load %arg4[%c0_38, %c0_39, %c1_40, %c0_41, %c0_42] : memref<2x4x2x32x16xbf16, #tpu.memory_space<vmem>>, vector<1x1x1x32x16xbf16>
    %72 = vector.shape_cast %71 : vector<1x1x1x32x16xbf16> to vector<32x16xbf16>
    %cst_43 = arith.constant dense<0.000000e+00> : vector<16x16xf32>
    %73 = tpu.matmul %32, %72, %cst_43 {dimension_numbers = #tpu.dot_dimension_numbers<[1], [0], [0], [1], [0, 0, 1, 1], [], []>} : vector<16x32xbf16>, vector<32x16xbf16>, vector<16x16xf32> -> vector<16x16xf32>
    %74 = vector.extract_strided_slice %0 {offsets = [4, 16], sizes = [1, 16], strides = [1, 1]} : vector<24x128xf32> to vector<1x16xf32>
    %75 = vector.broadcast %74 : vector<1x16xf32> to vector<16x16xf32>
    %76 = arith.addf %73, %75 : vector<16x16xf32>
    %c0_44 = arith.constant 0 : index
    %c1_45 = arith.constant 1 : index
    %c1_46 = arith.constant 1 : index
    %c0_47 = arith.constant 0 : index
    %c0_48 = arith.constant 0 : index
    %77 = vector.load %arg4[%c0_44, %c1_45, %c1_46, %c0_47, %c0_48] : memref<2x4x2x32x16xbf16, #tpu.memory_space<vmem>>, vector<1x1x1x32x16xbf16>
    %78 = vector.shape_cast %77 : vector<1x1x1x32x16xbf16> to vector<32x16xbf16>
    %cst_49 = arith.constant dense<0.000000e+00> : vector<16x16xf32>
    %79 = tpu.matmul %32, %78, %cst_49 {dimension_numbers = #tpu.dot_dimension_numbers<[1], [0], [0], [1], [0, 0, 1, 1], [], []>} : vector<16x32xbf16>, vector<32x16xbf16>, vector<16x16xf32> -> vector<16x16xf32>
    %80 = vector.extract_strided_slice %0 {offsets = [5, 16], sizes = [1, 16], strides = [1, 1]} : vector<24x128xf32> to vector<1x16xf32>
    %81 = vector.broadcast %80 : vector<1x16xf32> to vector<16x16xf32>
    %82 = arith.addf %79, %81 : vector<16x16xf32>
    %c0_50 = arith.constant 0 : index
    %c2_51 = arith.constant 2 : index
    %c1_52 = arith.constant 1 : index
    %c0_53 = arith.constant 0 : index
    %c0_54 = arith.constant 0 : index
    %83 = vector.load %arg4[%c0_50, %c2_51, %c1_52, %c0_53, %c0_54] : memref<2x4x2x32x16xbf16, #tpu.memory_space<vmem>>, vector<1x1x1x32x16xbf16>
    %84 = vector.shape_cast %83 : vector<1x1x1x32x16xbf16> to vector<32x16xbf16>
    %cst_55 = arith.constant dense<0.000000e+00> : vector<16x16xf32>
    %85 = tpu.matmul %32, %84, %cst_55 {dimension_numbers = #tpu.dot_dimension_numbers<[1], [0], [0], [1], [0, 0, 1, 1], [], []>} : vector<16x32xbf16>, vector<32x16xbf16>, vector<16x16xf32> -> vector<16x16xf32>
    %86 = vector.extract_strided_slice %0 {offsets = [6, 16], sizes = [1, 16], strides = [1, 1]} : vector<24x128xf32> to vector<1x16xf32>
    %87 = vector.broadcast %86 : vector<1x16xf32> to vector<16x16xf32>
    %88 = arith.addf %85, %87 : vector<16x16xf32>
    %89 = arith.truncf %76 : vector<16x16xf32> to vector<16x16xbf16>
    %90 = arith.truncf %82 : vector<16x16xf32> to vector<16x16xbf16>
    %cst_56 = arith.constant dense<0.000000e+00> : vector<16x16xf32>
    %91 = tpu.matmul %89, %90, %cst_56 {dimension_numbers = #tpu.dot_dimension_numbers<[1], [1], [0], [0], [0, 0, 1, 0], [], []>} : vector<16x16xbf16>, vector<16x16xbf16>, vector<16x16xf32> -> vector<16x16xf32>
    %92 = arith.addf %91, %31 : vector<16x16xf32>
    %cst_57 = arith.constant dense<0xFF800000> : vector<16xf32>
    %93 = vector.multi_reduction <maximumf>, %92, %cst_57 [1] : vector<16x16xf32> to vector<16xf32>
    %94 = vector.shape_cast %93 : vector<16xf32> to vector<16x1xf32>
    %95 = vector.broadcast %94 : vector<16x1xf32> to vector<16x16xf32>
    %96 = arith.subf %92, %95 : vector<16x16xf32>
    %97 = math.exp %96 : vector<16x16xf32>
    %cst_58 = arith.constant dense<0.000000e+00> : vector<16xf32>
    %98 = vector.multi_reduction <add>, %97, %cst_58 [1] : vector<16x16xf32> to vector<16xf32>
    %99 = vector.shape_cast %98 : vector<16xf32> to vector<16x1xf32>
    %100 = vector.broadcast %99 : vector<16x1xf32> to vector<16x16xf32>
    %101 = arith.divf %97, %100 : vector<16x16xf32>
    %102 = arith.truncf %101 : vector<16x16xf32> to vector<16x16xbf16>
    %103 = arith.truncf %88 : vector<16x16xf32> to vector<16x16xbf16>
    %cst_59 = arith.constant dense<0.000000e+00> : vector<16x16xf32>
    %104 = tpu.matmul %102, %103, %cst_59 {dimension_numbers = #tpu.dot_dimension_numbers<[1], [0], [0], [1], [0, 0, 1, 1], [], []>} : vector<16x16xbf16>, vector<16x16xbf16>, vector<16x16xf32> -> vector<16x16xf32>
    %105 = arith.truncf %104 : vector<16x16xf32> to vector<16x16xbf16>
    %c0_60 = arith.constant 0 : index
    %c3_61 = arith.constant 3 : index
    %c1_62 = arith.constant 1 : index
    %c0_63 = arith.constant 0 : index
    %c0_64 = arith.constant 0 : index
    %106 = vector.load %arg4[%c0_60, %c3_61, %c1_62, %c0_63, %c0_64] : memref<2x4x2x32x16xbf16, #tpu.memory_space<vmem>>, vector<1x1x1x32x16xbf16>
    %107 = vector.shape_cast %106 : vector<1x1x1x32x16xbf16> to vector<32x16xbf16>
    %cst_65 = arith.constant dense<0.000000e+00> : vector<16x32xf32>
    %108 = tpu.matmul %105, %107, %cst_65 {dimension_numbers = #tpu.dot_dimension_numbers<[1], [1], [0], [0], [0, 0, 1, 0], [], []>} : vector<16x16xbf16>, vector<32x16xbf16>, vector<16x32xf32> -> vector<16x32xf32>
    %109 = arith.addf %70, %108 : vector<16x32xf32>
    %110 = vector.extract_strided_slice %0 {offsets = [7, 0], sizes = [1, 32], strides = [1, 1]} : vector<24x128xf32> to vector<1x32xf32>
    %111 = vector.broadcast %110 : vector<1x32xf32> to vector<16x32xf32>
    %112 = arith.addf %109, %111 : vector<16x32xf32>
    %113 = arith.addf %112, %23 : vector<16x32xf32>
    %114 = vector.extract_strided_slice %0 {offsets = [8, 0], sizes = [1, 32], strides = [1, 1]} : vector<24x128xf32> to vector<1x32xf32>
    %115 = vector.extract_strided_slice %0 {offsets = [9, 0], sizes = [1, 32], strides = [1, 1]} : vector<24x128xf32> to vector<1x32xf32>
    %cst_66 = arith.constant dense<0.000000e+00> : vector<16xf32>
    %116 = vector.multi_reduction <add>, %113, %cst_66 [1] : vector<16x32xf32> to vector<16xf32>
    %117 = vector.shape_cast %116 : vector<16xf32> to vector<16x1xf32>
    %cst_67 = arith.constant 3.200000e+01 : f32
    %118 = vector.broadcast %cst_67 : f32 to vector<16x1xf32>
    %119 = arith.divf %117, %118 : vector<16x1xf32>
    %120 = vector.broadcast %119 : vector<16x1xf32> to vector<16x32xf32>
    %121 = arith.subf %113, %120 : vector<16x32xf32>
    %122 = arith.mulf %121, %121 : vector<16x32xf32>
    %cst_68 = arith.constant dense<0.000000e+00> : vector<16xf32>
    %123 = vector.multi_reduction <add>, %122, %cst_68 [1] : vector<16x32xf32> to vector<16xf32>
    %124 = vector.shape_cast %123 : vector<16xf32> to vector<16x1xf32>
    %cst_69 = arith.constant 3.200000e+01 : f32
    %125 = vector.broadcast %cst_69 : f32 to vector<16x1xf32>
    %126 = arith.divf %124, %125 : vector<16x1xf32>
    %cst_70 = arith.constant 9.99999974E-6 : f32
    %127 = vector.broadcast %cst_70 : f32 to vector<16x1xf32>
    %128 = arith.addf %126, %127 : vector<16x1xf32>
    %129 = math.rsqrt %128 : vector<16x1xf32>
    %130 = vector.broadcast %129 : vector<16x1xf32> to vector<16x32xf32>
    %131 = arith.mulf %121, %130 : vector<16x32xf32>
    %132 = vector.broadcast %114 : vector<1x32xf32> to vector<16x32xf32>
    %133 = arith.mulf %131, %132 : vector<16x32xf32>
    %134 = vector.broadcast %115 : vector<1x32xf32> to vector<16x32xf32>
    %135 = arith.addf %133, %134 : vector<16x32xf32>
    %136 = arith.truncf %135 : vector<16x32xf32> to vector<16x32xbf16>
    %c0_71 = arith.constant 0 : index
    %c0_72 = arith.constant 0 : index
    %c0_73 = arith.constant 0 : index
    %c0_74 = arith.constant 0 : index
    %137 = vector.load %arg5[%c0_71, %c0_72, %c0_73, %c0_74] : memref<2x2x32x64xbf16, #tpu.memory_space<vmem>>, vector<1x1x32x64xbf16>
    %138 = vector.shape_cast %137 : vector<1x1x32x64xbf16> to vector<32x64xbf16>
    %cst_75 = arith.constant dense<0.000000e+00> : vector<16x64xf32>
    %139 = tpu.matmul %136, %138, %cst_75 {dimension_numbers = #tpu.dot_dimension_numbers<[1], [0], [0], [1], [0, 0, 1, 1], [], []>} : vector<16x32xbf16>, vector<32x64xbf16>, vector<16x64xf32> -> vector<16x64xf32>
    %140 = vector.extract_strided_slice %0 {offsets = [10, 0], sizes = [1, 64], strides = [1, 1]} : vector<24x128xf32> to vector<1x64xf32>
    %141 = vector.broadcast %140 : vector<1x64xf32> to vector<16x64xf32>
    %142 = arith.addf %139, %141 : vector<16x64xf32>
    %cst_76 = arith.constant 5.000000e-01 : f32
    %143 = vector.broadcast %cst_76 : f32 to vector<16x64xf32>
    %144 = arith.mulf %143, %142 : vector<16x64xf32>
    %cst_77 = arith.constant 4.471500e-02 : f32
    %145 = vector.broadcast %cst_77 : f32 to vector<16x64xf32>
    %146 = arith.mulf %145, %142 : vector<16x64xf32>
    %147 = arith.mulf %146, %142 : vector<16x64xf32>
    %148 = arith.mulf %147, %142 : vector<16x64xf32>
    %149 = arith.addf %142, %148 : vector<16x64xf32>
    %cst_78 = arith.constant 0.797884583 : f32
    %150 = vector.broadcast %cst_78 : f32 to vector<16x64xf32>
    %151 = arith.mulf %150, %149 : vector<16x64xf32>
    %152 = math.tanh %151 : vector<16x64xf32>
    %cst_79 = arith.constant 1.000000e+00 : f32
    %153 = vector.broadcast %cst_79 : f32 to vector<16x64xf32>
    %154 = arith.addf %153, %152 : vector<16x64xf32>
    %155 = arith.mulf %144, %154 : vector<16x64xf32>
    %156 = arith.truncf %155 : vector<16x64xf32> to vector<16x64xbf16>
    %c0_80 = arith.constant 0 : index
    %c1_81 = arith.constant 1 : index
    %c0_82 = arith.constant 0 : index
    %c0_83 = arith.constant 0 : index
    %157 = vector.load %arg5[%c0_80, %c1_81, %c0_82, %c0_83] : memref<2x2x32x64xbf16, #tpu.memory_space<vmem>>, vector<1x1x32x64xbf16>
    %158 = vector.shape_cast %157 : vector<1x1x32x64xbf16> to vector<32x64xbf16>
    %cst_84 = arith.constant dense<0.000000e+00> : vector<16x32xf32>
    %159 = tpu.matmul %156, %158, %cst_84 {dimension_numbers = #tpu.dot_dimension_numbers<[1], [1], [0], [0], [0, 0, 1, 0], [], []>} : vector<16x64xbf16>, vector<32x64xbf16>, vector<16x32xf32> -> vector<16x32xf32>
    %160 = vector.extract_strided_slice %0 {offsets = [11, 0], sizes = [1, 32], strides = [1, 1]} : vector<24x128xf32> to vector<1x32xf32>
    %161 = vector.broadcast %160 : vector<1x32xf32> to vector<16x32xf32>
    %162 = arith.addf %159, %161 : vector<16x32xf32>
    %163 = arith.addf %162, %135 : vector<16x32xf32>
    %164 = vector.extract_strided_slice %0 {offsets = [12, 0], sizes = [1, 32], strides = [1, 1]} : vector<24x128xf32> to vector<1x32xf32>
    %165 = vector.extract_strided_slice %0 {offsets = [13, 0], sizes = [1, 32], strides = [1, 1]} : vector<24x128xf32> to vector<1x32xf32>
    %cst_85 = arith.constant dense<0.000000e+00> : vector<16xf32>
    %166 = vector.multi_reduction <add>, %163, %cst_85 [1] : vector<16x32xf32> to vector<16xf32>
    %167 = vector.shape_cast %166 : vector<16xf32> to vector<16x1xf32>
    %cst_86 = arith.constant 3.200000e+01 : f32
    %168 = vector.broadcast %cst_86 : f32 to vector<16x1xf32>
    %169 = arith.divf %167, %168 : vector<16x1xf32>
    %170 = vector.broadcast %169 : vector<16x1xf32> to vector<16x32xf32>
    %171 = arith.subf %163, %170 : vector<16x32xf32>
    %172 = arith.mulf %171, %171 : vector<16x32xf32>
    %cst_87 = arith.constant dense<0.000000e+00> : vector<16xf32>
    %173 = vector.multi_reduction <add>, %172, %cst_87 [1] : vector<16x32xf32> to vector<16xf32>
    %174 = vector.shape_cast %173 : vector<16xf32> to vector<16x1xf32>
    %cst_88 = arith.constant 3.200000e+01 : f32
    %175 = vector.broadcast %cst_88 : f32 to vector<16x1xf32>
    %176 = arith.divf %174, %175 : vector<16x1xf32>
    %cst_89 = arith.constant 9.99999974E-6 : f32
    %177 = vector.broadcast %cst_89 : f32 to vector<16x1xf32>
    %178 = arith.addf %176, %177 : vector<16x1xf32>
    %179 = math.rsqrt %178 : vector<16x1xf32>
    %180 = vector.broadcast %179 : vector<16x1xf32> to vector<16x32xf32>
    %181 = arith.mulf %171, %180 : vector<16x32xf32>
    %182 = vector.broadcast %164 : vector<1x32xf32> to vector<16x32xf32>
    %183 = arith.mulf %181, %182 : vector<16x32xf32>
    %184 = vector.broadcast %165 : vector<1x32xf32> to vector<16x32xf32>
    %185 = arith.addf %183, %184 : vector<16x32xf32>
    %186 = arith.truncf %185 : vector<16x32xf32> to vector<16x32xbf16>
    %c1_90 = arith.constant 1 : index
    %c0_91 = arith.constant 0 : index
    %c0_92 = arith.constant 0 : index
    %c0_93 = arith.constant 0 : index
    %c0_94 = arith.constant 0 : index
    %187 = vector.load %arg4[%c1_90, %c0_91, %c0_92, %c0_93, %c0_94] : memref<2x4x2x32x16xbf16, #tpu.memory_space<vmem>>, vector<1x1x1x32x16xbf16>
    %188 = vector.shape_cast %187 : vector<1x1x1x32x16xbf16> to vector<32x16xbf16>
    %cst_95 = arith.constant dense<0.000000e+00> : vector<16x16xf32>
    %189 = tpu.matmul %186, %188, %cst_95 {dimension_numbers = #tpu.dot_dimension_numbers<[1], [0], [0], [1], [0, 0, 1, 1], [], []>} : vector<16x32xbf16>, vector<32x16xbf16>, vector<16x16xf32> -> vector<16x16xf32>
    %190 = vector.extract_strided_slice %0 {offsets = [14, 0], sizes = [1, 16], strides = [1, 1]} : vector<24x128xf32> to vector<1x16xf32>
    %191 = vector.broadcast %190 : vector<1x16xf32> to vector<16x16xf32>
    %192 = arith.addf %189, %191 : vector<16x16xf32>
    %c1_96 = arith.constant 1 : index
    %c1_97 = arith.constant 1 : index
    %c0_98 = arith.constant 0 : index
    %c0_99 = arith.constant 0 : index
    %c0_100 = arith.constant 0 : index
    %193 = vector.load %arg4[%c1_96, %c1_97, %c0_98, %c0_99, %c0_100] : memref<2x4x2x32x16xbf16, #tpu.memory_space<vmem>>, vector<1x1x1x32x16xbf16>
    %194 = vector.shape_cast %193 : vector<1x1x1x32x16xbf16> to vector<32x16xbf16>
    %cst_101 = arith.constant dense<0.000000e+00> : vector<16x16xf32>
    %195 = tpu.matmul %186, %194, %cst_101 {dimension_numbers = #tpu.dot_dimension_numbers<[1], [0], [0], [1], [0, 0, 1, 1], [], []>} : vector<16x32xbf16>, vector<32x16xbf16>, vector<16x16xf32> -> vector<16x16xf32>
    %196 = vector.extract_strided_slice %0 {offsets = [15, 0], sizes = [1, 16], strides = [1, 1]} : vector<24x128xf32> to vector<1x16xf32>
    %197 = vector.broadcast %196 : vector<1x16xf32> to vector<16x16xf32>
    %198 = arith.addf %195, %197 : vector<16x16xf32>
    %c1_102 = arith.constant 1 : index
    %c2_103 = arith.constant 2 : index
    %c0_104 = arith.constant 0 : index
    %c0_105 = arith.constant 0 : index
    %c0_106 = arith.constant 0 : index
    %199 = vector.load %arg4[%c1_102, %c2_103, %c0_104, %c0_105, %c0_106] : memref<2x4x2x32x16xbf16, #tpu.memory_space<vmem>>, vector<1x1x1x32x16xbf16>
    %200 = vector.shape_cast %199 : vector<1x1x1x32x16xbf16> to vector<32x16xbf16>
    %cst_107 = arith.constant dense<0.000000e+00> : vector<16x16xf32>
    %201 = tpu.matmul %186, %200, %cst_107 {dimension_numbers = #tpu.dot_dimension_numbers<[1], [0], [0], [1], [0, 0, 1, 1], [], []>} : vector<16x32xbf16>, vector<32x16xbf16>, vector<16x16xf32> -> vector<16x16xf32>
    %202 = vector.extract_strided_slice %0 {offsets = [16, 0], sizes = [1, 16], strides = [1, 1]} : vector<24x128xf32> to vector<1x16xf32>
    %203 = vector.broadcast %202 : vector<1x16xf32> to vector<16x16xf32>
    %204 = arith.addf %201, %203 : vector<16x16xf32>
    %205 = arith.truncf %192 : vector<16x16xf32> to vector<16x16xbf16>
    %206 = arith.truncf %198 : vector<16x16xf32> to vector<16x16xbf16>
    %cst_108 = arith.constant dense<0.000000e+00> : vector<16x16xf32>
    %207 = tpu.matmul %205, %206, %cst_108 {dimension_numbers = #tpu.dot_dimension_numbers<[1], [1], [0], [0], [0, 0, 1, 0], [], []>} : vector<16x16xbf16>, vector<16x16xbf16>, vector<16x16xf32> -> vector<16x16xf32>
    %208 = arith.addf %207, %31 : vector<16x16xf32>
    %cst_109 = arith.constant dense<0xFF800000> : vector<16xf32>
    %209 = vector.multi_reduction <maximumf>, %208, %cst_109 [1] : vector<16x16xf32> to vector<16xf32>
    %210 = vector.shape_cast %209 : vector<16xf32> to vector<16x1xf32>
    %211 = vector.broadcast %210 : vector<16x1xf32> to vector<16x16xf32>
    %212 = arith.subf %208, %211 : vector<16x16xf32>
    %213 = math.exp %212 : vector<16x16xf32>
    %cst_110 = arith.constant dense<0.000000e+00> : vector<16xf32>
    %214 = vector.multi_reduction <add>, %213, %cst_110 [1] : vector<16x16xf32> to vector<16xf32>
    %215 = vector.shape_cast %214 : vector<16xf32> to vector<16x1xf32>
    %216 = vector.broadcast %215 : vector<16x1xf32> to vector<16x16xf32>
    %217 = arith.divf %213, %216 : vector<16x16xf32>
    %218 = arith.truncf %217 : vector<16x16xf32> to vector<16x16xbf16>
    %219 = arith.truncf %204 : vector<16x16xf32> to vector<16x16xbf16>
    %cst_111 = arith.constant dense<0.000000e+00> : vector<16x16xf32>
    %220 = tpu.matmul %218, %219, %cst_111 {dimension_numbers = #tpu.dot_dimension_numbers<[1], [0], [0], [1], [0, 0, 1, 1], [], []>} : vector<16x16xbf16>, vector<16x16xbf16>, vector<16x16xf32> -> vector<16x16xf32>
    %221 = arith.truncf %220 : vector<16x16xf32> to vector<16x16xbf16>
    %c1_112 = arith.constant 1 : index
    %c3_113 = arith.constant 3 : index
    %c0_114 = arith.constant 0 : index
    %c0_115 = arith.constant 0 : index
    %c0_116 = arith.constant 0 : index
    %222 = vector.load %arg4[%c1_112, %c3_113, %c0_114, %c0_115, %c0_116] : memref<2x4x2x32x16xbf16, #tpu.memory_space<vmem>>, vector<1x1x1x32x16xbf16>
    %223 = vector.shape_cast %222 : vector<1x1x1x32x16xbf16> to vector<32x16xbf16>
    %cst_117 = arith.constant dense<0.000000e+00> : vector<16x32xf32>
    %224 = tpu.matmul %221, %223, %cst_117 {dimension_numbers = #tpu.dot_dimension_numbers<[1], [1], [0], [0], [0, 0, 1, 0], [], []>} : vector<16x16xbf16>, vector<32x16xbf16>, vector<16x32xf32> -> vector<16x32xf32>
    %c1_118 = arith.constant 1 : index
    %c0_119 = arith.constant 0 : index
    %c1_120 = arith.constant 1 : index
    %c0_121 = arith.constant 0 : index
    %c0_122 = arith.constant 0 : index
    %225 = vector.load %arg4[%c1_118, %c0_119, %c1_120, %c0_121, %c0_122] : memref<2x4x2x32x16xbf16, #tpu.memory_space<vmem>>, vector<1x1x1x32x16xbf16>
    %226 = vector.shape_cast %225 : vector<1x1x1x32x16xbf16> to vector<32x16xbf16>
    %cst_123 = arith.constant dense<0.000000e+00> : vector<16x16xf32>
    %227 = tpu.matmul %186, %226, %cst_123 {dimension_numbers = #tpu.dot_dimension_numbers<[1], [0], [0], [1], [0, 0, 1, 1], [], []>} : vector<16x32xbf16>, vector<32x16xbf16>, vector<16x16xf32> -> vector<16x16xf32>
    %228 = vector.extract_strided_slice %0 {offsets = [14, 16], sizes = [1, 16], strides = [1, 1]} : vector<24x128xf32> to vector<1x16xf32>
    %229 = vector.broadcast %228 : vector<1x16xf32> to vector<16x16xf32>
    %230 = arith.addf %227, %229 : vector<16x16xf32>
    %c1_124 = arith.constant 1 : index
    %c1_125 = arith.constant 1 : index
    %c1_126 = arith.constant 1 : index
    %c0_127 = arith.constant 0 : index
    %c0_128 = arith.constant 0 : index
    %231 = vector.load %arg4[%c1_124, %c1_125, %c1_126, %c0_127, %c0_128] : memref<2x4x2x32x16xbf16, #tpu.memory_space<vmem>>, vector<1x1x1x32x16xbf16>
    %232 = vector.shape_cast %231 : vector<1x1x1x32x16xbf16> to vector<32x16xbf16>
    %cst_129 = arith.constant dense<0.000000e+00> : vector<16x16xf32>
    %233 = tpu.matmul %186, %232, %cst_129 {dimension_numbers = #tpu.dot_dimension_numbers<[1], [0], [0], [1], [0, 0, 1, 1], [], []>} : vector<16x32xbf16>, vector<32x16xbf16>, vector<16x16xf32> -> vector<16x16xf32>
    %234 = vector.extract_strided_slice %0 {offsets = [15, 16], sizes = [1, 16], strides = [1, 1]} : vector<24x128xf32> to vector<1x16xf32>
    %235 = vector.broadcast %234 : vector<1x16xf32> to vector<16x16xf32>
    %236 = arith.addf %233, %235 : vector<16x16xf32>
    %c1_130 = arith.constant 1 : index
    %c2_131 = arith.constant 2 : index
    %c1_132 = arith.constant 1 : index
    %c0_133 = arith.constant 0 : index
    %c0_134 = arith.constant 0 : index
    %237 = vector.load %arg4[%c1_130, %c2_131, %c1_132, %c0_133, %c0_134] : memref<2x4x2x32x16xbf16, #tpu.memory_space<vmem>>, vector<1x1x1x32x16xbf16>
    %238 = vector.shape_cast %237 : vector<1x1x1x32x16xbf16> to vector<32x16xbf16>
    %cst_135 = arith.constant dense<0.000000e+00> : vector<16x16xf32>
    %239 = tpu.matmul %186, %238, %cst_135 {dimension_numbers = #tpu.dot_dimension_numbers<[1], [0], [0], [1], [0, 0, 1, 1], [], []>} : vector<16x32xbf16>, vector<32x16xbf16>, vector<16x16xf32> -> vector<16x16xf32>
    %240 = vector.extract_strided_slice %0 {offsets = [16, 16], sizes = [1, 16], strides = [1, 1]} : vector<24x128xf32> to vector<1x16xf32>
    %241 = vector.broadcast %240 : vector<1x16xf32> to vector<16x16xf32>
    %242 = arith.addf %239, %241 : vector<16x16xf32>
    %243 = arith.truncf %230 : vector<16x16xf32> to vector<16x16xbf16>
    %244 = arith.truncf %236 : vector<16x16xf32> to vector<16x16xbf16>
    %cst_136 = arith.constant dense<0.000000e+00> : vector<16x16xf32>
    %245 = tpu.matmul %243, %244, %cst_136 {dimension_numbers = #tpu.dot_dimension_numbers<[1], [1], [0], [0], [0, 0, 1, 0], [], []>} : vector<16x16xbf16>, vector<16x16xbf16>, vector<16x16xf32> -> vector<16x16xf32>
    %246 = arith.addf %245, %31 : vector<16x16xf32>
    %cst_137 = arith.constant dense<0xFF800000> : vector<16xf32>
    %247 = vector.multi_reduction <maximumf>, %246, %cst_137 [1] : vector<16x16xf32> to vector<16xf32>
    %248 = vector.shape_cast %247 : vector<16xf32> to vector<16x1xf32>
    %249 = vector.broadcast %248 : vector<16x1xf32> to vector<16x16xf32>
    %250 = arith.subf %246, %249 : vector<16x16xf32>
    %251 = math.exp %250 : vector<16x16xf32>
    %cst_138 = arith.constant dense<0.000000e+00> : vector<16xf32>
    %252 = vector.multi_reduction <add>, %251, %cst_138 [1] : vector<16x16xf32> to vector<16xf32>
    %253 = vector.shape_cast %252 : vector<16xf32> to vector<16x1xf32>
    %254 = vector.broadcast %253 : vector<16x1xf32> to vector<16x16xf32>
    %255 = arith.divf %251, %254 : vector<16x16xf32>
    %256 = arith.truncf %255 : vector<16x16xf32> to vector<16x16xbf16>
    %257 = arith.truncf %242 : vector<16x16xf32> to vector<16x16xbf16>
    %cst_139 = arith.constant dense<0.000000e+00> : vector<16x16xf32>
    %258 = tpu.matmul %256, %257, %cst_139 {dimension_numbers = #tpu.dot_dimension_numbers<[1], [0], [0], [1], [0, 0, 1, 1], [], []>} : vector<16x16xbf16>, vector<16x16xbf16>, vector<16x16xf32> -> vector<16x16xf32>
    %259 = arith.truncf %258 : vector<16x16xf32> to vector<16x16xbf16>
    %c1_140 = arith.constant 1 : index
    %c3_141 = arith.constant 3 : index
    %c1_142 = arith.constant 1 : index
    %c0_143 = arith.constant 0 : index
    %c0_144 = arith.constant 0 : index
    %260 = vector.load %arg4[%c1_140, %c3_141, %c1_142, %c0_143, %c0_144] : memref<2x4x2x32x16xbf16, #tpu.memory_space<vmem>>, vector<1x1x1x32x16xbf16>
    %261 = vector.shape_cast %260 : vector<1x1x1x32x16xbf16> to vector<32x16xbf16>
    %cst_145 = arith.constant dense<0.000000e+00> : vector<16x32xf32>
    %262 = tpu.matmul %259, %261, %cst_145 {dimension_numbers = #tpu.dot_dimension_numbers<[1], [1], [0], [0], [0, 0, 1, 0], [], []>} : vector<16x16xbf16>, vector<32x16xbf16>, vector<16x32xf32> -> vector<16x32xf32>
    %263 = arith.addf %224, %262 : vector<16x32xf32>
    %264 = vector.extract_strided_slice %0 {offsets = [17, 0], sizes = [1, 32], strides = [1, 1]} : vector<24x128xf32> to vector<1x32xf32>
    %265 = vector.broadcast %264 : vector<1x32xf32> to vector<16x32xf32>
    %266 = arith.addf %263, %265 : vector<16x32xf32>
    %267 = arith.addf %266, %185 : vector<16x32xf32>
    %268 = vector.extract_strided_slice %0 {offsets = [18, 0], sizes = [1, 32], strides = [1, 1]} : vector<24x128xf32> to vector<1x32xf32>
    %269 = vector.extract_strided_slice %0 {offsets = [19, 0], sizes = [1, 32], strides = [1, 1]} : vector<24x128xf32> to vector<1x32xf32>
    %cst_146 = arith.constant dense<0.000000e+00> : vector<16xf32>
    %270 = vector.multi_reduction <add>, %267, %cst_146 [1] : vector<16x32xf32> to vector<16xf32>
    %271 = vector.shape_cast %270 : vector<16xf32> to vector<16x1xf32>
    %cst_147 = arith.constant 3.200000e+01 : f32
    %272 = vector.broadcast %cst_147 : f32 to vector<16x1xf32>
    %273 = arith.divf %271, %272 : vector<16x1xf32>
    %274 = vector.broadcast %273 : vector<16x1xf32> to vector<16x32xf32>
    %275 = arith.subf %267, %274 : vector<16x32xf32>
    %276 = arith.mulf %275, %275 : vector<16x32xf32>
    %cst_148 = arith.constant dense<0.000000e+00> : vector<16xf32>
    %277 = vector.multi_reduction <add>, %276, %cst_148 [1] : vector<16x32xf32> to vector<16xf32>
    %278 = vector.shape_cast %277 : vector<16xf32> to vector<16x1xf32>
    %cst_149 = arith.constant 3.200000e+01 : f32
    %279 = vector.broadcast %cst_149 : f32 to vector<16x1xf32>
    %280 = arith.divf %278, %279 : vector<16x1xf32>
    %cst_150 = arith.constant 9.99999974E-6 : f32
    %281 = vector.broadcast %cst_150 : f32 to vector<16x1xf32>
    %282 = arith.addf %280, %281 : vector<16x1xf32>
    %283 = math.rsqrt %282 : vector<16x1xf32>
    %284 = vector.broadcast %283 : vector<16x1xf32> to vector<16x32xf32>
    %285 = arith.mulf %275, %284 : vector<16x32xf32>
    %286 = vector.broadcast %268 : vector<1x32xf32> to vector<16x32xf32>
    %287 = arith.mulf %285, %286 : vector<16x32xf32>
    %288 = vector.broadcast %269 : vector<1x32xf32> to vector<16x32xf32>
    %289 = arith.addf %287, %288 : vector<16x32xf32>
    %290 = arith.truncf %289 : vector<16x32xf32> to vector<16x32xbf16>
    %c1_151 = arith.constant 1 : index
    %c0_152 = arith.constant 0 : index
    %c0_153 = arith.constant 0 : index
    %c0_154 = arith.constant 0 : index
    %291 = vector.load %arg5[%c1_151, %c0_152, %c0_153, %c0_154] : memref<2x2x32x64xbf16, #tpu.memory_space<vmem>>, vector<1x1x32x64xbf16>
    %292 = vector.shape_cast %291 : vector<1x1x32x64xbf16> to vector<32x64xbf16>
    %cst_155 = arith.constant dense<0.000000e+00> : vector<16x64xf32>
    %293 = tpu.matmul %290, %292, %cst_155 {dimension_numbers = #tpu.dot_dimension_numbers<[1], [0], [0], [1], [0, 0, 1, 1], [], []>} : vector<16x32xbf16>, vector<32x64xbf16>, vector<16x64xf32> -> vector<16x64xf32>
    %294 = vector.extract_strided_slice %0 {offsets = [20, 0], sizes = [1, 64], strides = [1, 1]} : vector<24x128xf32> to vector<1x64xf32>
    %295 = vector.broadcast %294 : vector<1x64xf32> to vector<16x64xf32>
    %296 = arith.addf %293, %295 : vector<16x64xf32>
    %cst_156 = arith.constant 5.000000e-01 : f32
    %297 = vector.broadcast %cst_156 : f32 to vector<16x64xf32>
    %298 = arith.mulf %297, %296 : vector<16x64xf32>
    %cst_157 = arith.constant 4.471500e-02 : f32
    %299 = vector.broadcast %cst_157 : f32 to vector<16x64xf32>
    %300 = arith.mulf %299, %296 : vector<16x64xf32>
    %301 = arith.mulf %300, %296 : vector<16x64xf32>
    %302 = arith.mulf %301, %296 : vector<16x64xf32>
    %303 = arith.addf %296, %302 : vector<16x64xf32>
    %cst_158 = arith.constant 0.797884583 : f32
    %304 = vector.broadcast %cst_158 : f32 to vector<16x64xf32>
    %305 = arith.mulf %304, %303 : vector<16x64xf32>
    %306 = math.tanh %305 : vector<16x64xf32>
    %cst_159 = arith.constant 1.000000e+00 : f32
    %307 = vector.broadcast %cst_159 : f32 to vector<16x64xf32>
    %308 = arith.addf %307, %306 : vector<16x64xf32>
    %309 = arith.mulf %298, %308 : vector<16x64xf32>
    %310 = arith.truncf %309 : vector<16x64xf32> to vector<16x64xbf16>
    %c1_160 = arith.constant 1 : index
    %c1_161 = arith.constant 1 : index
    %c0_162 = arith.constant 0 : index
    %c0_163 = arith.constant 0 : index
    %311 = vector.load %arg5[%c1_160, %c1_161, %c0_162, %c0_163] : memref<2x2x32x64xbf16, #tpu.memory_space<vmem>>, vector<1x1x32x64xbf16>
    %312 = vector.shape_cast %311 : vector<1x1x32x64xbf16> to vector<32x64xbf16>
    %cst_164 = arith.constant dense<0.000000e+00> : vector<16x32xf32>
    %313 = tpu.matmul %310, %312, %cst_164 {dimension_numbers = #tpu.dot_dimension_numbers<[1], [1], [0], [0], [0, 0, 1, 0], [], []>} : vector<16x64xbf16>, vector<32x64xbf16>, vector<16x32xf32> -> vector<16x32xf32>
    %314 = vector.extract_strided_slice %0 {offsets = [21, 0], sizes = [1, 32], strides = [1, 1]} : vector<24x128xf32> to vector<1x32xf32>
    %315 = vector.broadcast %314 : vector<1x32xf32> to vector<16x32xf32>
    %316 = arith.addf %313, %315 : vector<16x32xf32>
    %317 = arith.addf %316, %289 : vector<16x32xf32>
    %318 = vector.extract_strided_slice %0 {offsets = [22, 0], sizes = [1, 32], strides = [1, 1]} : vector<24x128xf32> to vector<1x32xf32>
    %319 = vector.extract_strided_slice %0 {offsets = [23, 0], sizes = [1, 32], strides = [1, 1]} : vector<24x128xf32> to vector<1x32xf32>
    %cst_165 = arith.constant dense<0.000000e+00> : vector<16xf32>
    %320 = vector.multi_reduction <add>, %317, %cst_165 [1] : vector<16x32xf32> to vector<16xf32>
    %321 = vector.shape_cast %320 : vector<16xf32> to vector<16x1xf32>
    %cst_166 = arith.constant 3.200000e+01 : f32
    %322 = vector.broadcast %cst_166 : f32 to vector<16x1xf32>
    %323 = arith.divf %321, %322 : vector<16x1xf32>
    %324 = vector.broadcast %323 : vector<16x1xf32> to vector<16x32xf32>
    %325 = arith.subf %317, %324 : vector<16x32xf32>
    %326 = arith.mulf %325, %325 : vector<16x32xf32>
    %cst_167 = arith.constant dense<0.000000e+00> : vector<16xf32>
    %327 = vector.multi_reduction <add>, %326, %cst_167 [1] : vector<16x32xf32> to vector<16xf32>
    %328 = vector.shape_cast %327 : vector<16xf32> to vector<16x1xf32>
    %cst_168 = arith.constant 3.200000e+01 : f32
    %329 = vector.broadcast %cst_168 : f32 to vector<16x1xf32>
    %330 = arith.divf %328, %329 : vector<16x1xf32>
    %cst_169 = arith.constant 9.99999974E-6 : f32
    %331 = vector.broadcast %cst_169 : f32 to vector<16x1xf32>
    %332 = arith.addf %330, %331 : vector<16x1xf32>
    %333 = math.rsqrt %332 : vector<16x1xf32>
    %334 = vector.broadcast %333 : vector<16x1xf32> to vector<16x32xf32>
    %335 = arith.mulf %325, %334 : vector<16x32xf32>
    %336 = vector.broadcast %318 : vector<1x32xf32> to vector<16x32xf32>
    %337 = arith.mulf %335, %336 : vector<16x32xf32>
    %338 = vector.broadcast %319 : vector<1x32xf32> to vector<16x32xf32>
    %339 = arith.addf %337, %338 : vector<16x32xf32>
    %340 = vector.extract_strided_slice %339 {offsets = [0, 0], sizes = [1, 32], strides = [1, 1]} : vector<16x32xf32> to vector<1x32xf32>
    %341 = vector.extract_strided_slice %339 {offsets = [8, 0], sizes = [1, 32], strides = [1, 1]} : vector<16x32xf32> to vector<1x32xf32>
    %342 = tpu.concatenate %340, %341 in 0 : vector<1x32xf32>, vector<1x32xf32> -> vector<2x32xf32>
    %343 = vector.extract_strided_slice %0 {offsets = [2, 0], sizes = [1, 32], strides = [1, 1]} : vector<24x128xf32> to vector<1x32xf32>
    %344 = vector.broadcast %343 : vector<1x32xf32> to vector<2x32xf32>
    %345 = arith.mulf %342, %344 : vector<2x32xf32>
    %cst_170 = arith.constant dense<0.000000e+00> : vector<2xf32>
    %346 = vector.multi_reduction <add>, %345, %cst_170 [1] : vector<2x32xf32> to vector<2xf32>
    %347 = vector.shape_cast %346 : vector<2xf32> to vector<2x1xf32>
    %348 = vector.extract_strided_slice %0 {offsets = [3, 0], sizes = [1, 1], strides = [1, 1]} : vector<24x128xf32> to vector<1x1xf32>
    %349 = vector.broadcast %348 : vector<1x1xf32> to vector<2x1xf32>
    %350 = arith.addf %347, %349 : vector<2x1xf32>
    %351 = vector.shape_cast %350 : vector<2x1xf32> to vector<2x1xf32>
    %352 = vector.broadcast %351 : vector<2x1xf32> to vector<2x128xf32>
    %c0_171 = arith.constant 0 : index
    %c0_172 = arith.constant 0 : index
    %353 = vector.load %arg6[%c0_171, %c0_172] : memref<2x128xf32, #tpu.memory_space<vmem>>, vector<2x128xf32>
    tpu.vector_store %arg6[%c0_171, %c0_172], %352 {strides = array<i32>} : memref<2x128xf32, #tpu.memory_space<vmem>>, vector<2x128xf32>,
    return
  }
}

</mosaic_0001>

<llo_original>
// kernel: codebert_clone_detector_forward.1
$region0: #{codebert_clone_detector_forward.1}
  #allocation0 [shape = 'u32[]', space=smem, size = 0x4, offset = 0x4, fixed_abs, tag = 'smem constant byte address 0x4 - core index']
  #allocation1 [shape = 'u32[144,128]{1,0:T(1,128)}', space=vmem, size = 0x12000, scoped, tag = 'internal scratch']
  %s0 = inlined_call_operand.vmem [shape: f32[16,32], index: 0, kind: input, shape index: {}]
  %s1 = inlined_call_operand.vmem [shape: f32[16,1], index: 1, kind: input, shape index: {}]
  %s2 = inlined_call_operand.vmem [shape: f32[1,16], index: 2, kind: input, shape index: {}]
  %s3 = inlined_call_operand.vmem [shape: f32[24,128], index: 3, kind: input, shape index: {}]
  %s4 = inlined_call_operand.vmem [shape: bf16[2,4,2,32,16], index: 4, kind: input, shape index: {}]
  %s5 = inlined_call_operand.vmem [shape: bf16[2,2,32,64], index: 5, kind: input, shape index: {}]
  %s6 = inlined_call_operand.vmem [shape: f32[2,128], index: 6, kind: output, shape index: {}]
  %s7 = sld [smem:[#allocation0]]
  $region34: #{codebert_clone_detector_forward.1} parent=0
    _
  %s9 = ssub.s32 1, %s7
  %s10 = scalar_select 0, %s9, %s7
  // Predicated region
  $region2: #{codebert_clone_detector_forward.1} parent=0 // pred_check
    _
  $region3: #{codebert_clone_detector_forward.1} parent=0 // pred_check_branch
    %12 = sbr.rel (0) target = $region5
  $region4: #{codebert_clone_detector_forward.1} parent=0 // pred_region
    _
  $region5: #{codebert_clone_detector_forward.1} parent=0 // pred_fallthru
    _
  // Predicated region
  $region6: #{codebert_clone_detector_forward.1} parent=0 // pred_check
    _
  $region7: #{codebert_clone_detector_forward.1} parent=0 // pred_check_branch
    %14 = sbr.rel (0) target = $region9
  $region8: #{codebert_clone_detector_forward.1} parent=0 // pred_region
    _
  $region9: #{codebert_clone_detector_forward.1} parent=0 // pred_fallthru
    _
  // Predicated region
  $region10: #{codebert_clone_detector_forward.1} parent=0 // pred_check
    _
  $region11: #{codebert_clone_detector_forward.1} parent=0 // pred_check_branch
    %16 = sbr.rel (0) target = $region13
  $region12: #{codebert_clone_detector_forward.1} parent=0 // pred_region
    _
  $region13: #{codebert_clone_detector_forward.1} parent=0 // pred_fallthru
    _
  // Predicated region
  $region14: #{codebert_clone_detector_forward.1} parent=0 // pred_check
    _
  $region15: #{codebert_clone_detector_forward.1} parent=0 // pred_check_branch
    %18 = sbr.rel (0) target = $region17
  $region16: #{codebert_clone_detector_forward.1} parent=0 // pred_region
    _
  $region17: #{codebert_clone_detector_forward.1} parent=0 // pred_fallthru
    _
  // Predicated region
  $region18: #{codebert_clone_detector_forward.1} parent=0 // pred_check
    _
  $region19: #{codebert_clone_detector_forward.1} parent=0 // pred_check_branch
    %20 = sbr.rel (0) target = $region21
  $region20: #{codebert_clone_detector_forward.1} parent=0 // pred_region
    _
  $region21: #{codebert_clone_detector_forward.1} parent=0 // pred_fallthru
    _
  // Predicated region
  $region22: #{codebert_clone_detector_forward.1} parent=0 // pred_check
    _
  $region23: #{codebert_clone_detector_forward.1} parent=0 // pred_check_branch
    %22 = sbr.rel (0) target = $region25
  $region24: #{codebert_clone_detector_forward.1} parent=0 // pred_region
    _
  $region25: #{codebert_clone_detector_forward.1} parent=0 // pred_fallthru
    _
  %v24 = vld [vmem:[%s3] sm:$0xff]
  %v25 = vld [vmem:[%s3 + $0x8] sm:$0xff]
  %v26 = vld [vmem:[%s3 + $0x10] sm:$0xff]
  %v27 = vld [vmem:[%s0] sm:$0xff]
  %v28 = vld [vmem:[%s0 + $0x8] sm:$0xff]
  %vm29 = vcmask 261120
  %v30 = vsel %vm29, %v27, 0.0
  %31 = vadd.xlane.f32.xlu0 %v30
  %v32 = vpop.xlane.xlu0 %31
  %v33 = vsel %vm29, %v28, 0.0
  %34 = vadd.xlane.f32.xlu0 %v33
  %v35 = vpop.xlane.xlu0 %34
  %v36 = vrcp.pop 32.0
  %v37 = vmul.f32 %v32, %v36
  %v38 = vmul.f32 %v35, %v36
  %v39 = vsub.f32 %v27, %v37
  %v40 = vsub.f32 %v28, %v38
  %v41 = vmul.f32 %v39, %v39
  %v42 = vmul.f32 %v40, %v40
  %v43 = vsel %vm29, %v41, 0.0
  %44 = vadd.xlane.f32.xlu0 %v43
  %v45 = vpop.xlane.xlu0 %44
  %v46 = vsel %vm29, %v42, 0.0
  %47 = vadd.xlane.f32.xlu0 %v46
  %v48 = vpop.xlane.xlu0 %47
  %v49 = vmul.f32 %v45, %v36
  %v50 = vmul.f32 %v48, %v36
  %v51 = vadd.f32 %v49, 1e-05
  %v52 = vadd.f32 %v50, 1e-05
  %v53 = vrsqrt.pop %v51
  %v54 = vrsqrt.pop %v52
  %v55 = vmul.f32 %v39, %v53
  %v56 = vmul.f32 %v40, %v54
  %v57 = vlaneseq
  %v58 = vshrl.u32 %v57, 7
  %v59 = vsub.s32 0, %v58
  %v60 = vrot.slane %v24, %v59
  %v61 = vmul.f32 %v55, %v60
  %v62 = vmul.f32 %v56, %v60
  %v63 = vlaneseq
  %v64 = vshrl.u32 %v63, 7
  %v65 = vsub.s32 1, %v64
  %v66 = vrot.slane %v24, %v65
  %v67 = vadd.f32 %v61, %v66
  %v68 = vadd.f32 %v62, %v66
  %v69 = vld [vmem:[%s1] sm:$0xff]
  %v70 = vld [vmem:[%s1 + $0x8] sm:$0xff]
  %v71 = vld [vmem:[%s2] sm:$0x1]
  %73 = vset.pattern.permute.xlu0 0
  %74 = vperm.xlu0 %73, %v69
  %v75 = vpop.permute.xlu0 %74
  %78 = vset.pattern.permute.xlu0 0
  %79 = vperm.xlu0 %78, %v70
  %v80 = vpop.permute.xlu0 %79
  %v83 = vlaneseq
  %v84 = vshrl.u32 %v83, 7
  %v85 = vsub.s32 0, %v84
  %v86 = vrot.slane %v71, %v85
  %vm88 = vcmp.eq.f32.partialorder %v75, %v86
  %vm89 = vcmp.eq.f32.partialorder %v80, %v86
  %v90 = vsel %vm88, 0.0, -1e+09
  %v91 = vsel %vm89, 0.0, -1e+09
  %v92 = vpack.c.bf16 %v68, %v67
  %v93 = vld [vmem:[%s4] sm:$0xf]
  %v94 = vld [vmem:[%s4 + $0x4] sm:$0xf]
  %v95 = vld [vmem:[%s4 + $0x8] sm:$0xf]
  %v96 = vld [vmem:[%s4 + $0xc] sm:$0xf]
  %v97 = vlaneseq
  %v98 = vshrl.u32 %v97, 7
  %v99 = vsub.s32 4, %v98
  %v100 = vrot.slane %v24, %v99
  %v105 = vunpack.c.l.b16 %v93
  %v106 = vunpack.c.l.b16 %v94
  %v107 = vunpack.c.l.b16 %v95
  %v108 = vunpack.c.l.b16 %v96
  %v109 = vpack.c.b16 %v106, %v105
  %v110 = vpack.c.b16 %v108, %v107
  %v114 = vsel %vm29, %v92, 0
  %116 = vmatprep.subr.bf16.mxu0 0
  %117 = vmatpush1.bf16.msra.mxu0 0
  %118 = vmatprep.subr.bf16.mxu0 0
  %119 = vmatpush1.bf16.msra.mxu0 0
  %120 = vmatprep.subr.bf16.mxu0 0
  %121 = vmatpush1.bf16.msra.mxu0 0
  %122 = vmatprep.subr.bf16.mxu0 0
  %123 = vmatpush1.bf16.msra.mxu0 0
  %124 = vmatprep.subr.bf16.mxu0 0
  %125 = vmatpush1.bf16.msra.mxu0 0
  %126 = vmatprep.subr.bf16.mxu0 0
  %127 = vmatpush1.bf16.msra.mxu0 0
  %128 = vmatprep.subr.bf16.mxu0 0
  %129 = vmatpush1.bf16.msra.mxu0 %v110
  %130 = vmatprep.subr.bf16.mxu0 0
  %131 = vmatpush1.bf16.msra.mxu0 %v109
  %132 = vmatprep.subr.bf16.mxu0 0
  %133 = vmatpush2.bf16.msra.mxu0 0
  %134 = vmatprep.subr.bf16.mxu0 0
  %135 = vmatpush2.bf16.msra.mxu0 0
  %136 = vmatprep.subr.bf16.mxu0 0
  %137 = vmatpush2.bf16.msra.mxu0 0
  %138 = vmatprep.subr.bf16.mxu0 0
  %139 = vmatpush2.bf16.msra.mxu0 0
  %140 = vmatprep.subr.bf16.mxu0 0
  %141 = vmatpush2.bf16.msra.mxu0 0
  %142 = vmatprep.subr.bf16.mxu0 0
  %143 = vmatpush2.bf16.msra.mxu0 0
  %144 = vmatprep.subr.bf16.mxu0 0
  %145 = vmatpush2.bf16.msra.mxu0 0
  %146 = vmatprep.subr.bf16.mxu0 0
  %147 = vmatpush2.bf16.msra.mxu0 0
  %148 = vmatprep.mubr.bf16.mxu0 0
  %149 = vmatmul.mubr.bf16.gmra.mxu0 %v114
  %v150 = vpop.f32.mrf.mxu0
  %v151 = vadd.f32 %v100, %v150
  %v152 = vpop.f32.mrf.mxu0
  %v153 = vpop.f32.mrf.mxu0
  %v154 = vadd.f32 %v100, %v153
  %v155 = vpop.f32.mrf.mxu0
  %156 = vdwg.mxu0
  %s157 = scalar_lea.vmem %s4, 32
  %v158 = vld [vmem:[%s157] sm:$0xf]
  %v159 = vld [vmem:[%s157 + $0x4] sm:$0xf]
  %v160 = vld [vmem:[%s157 + $0x8] sm:$0xf]
  %v161 = vld [vmem:[%s157 + $0xc] sm:$0xf]
  %v162 = vlaneseq
  %v163 = vshrl.u32 %v162, 7
  %v164 = vsub.s32 5, %v163
  %v165 = vrot.slane %v24, %v164
  %v170 = vunpack.c.l.b16 %v158
  %v171 = vunpack.c.l.b16 %v159
  %v172 = vunpack.c.l.b16 %v160
  %v173 = vunpack.c.l.b16 %v161
  %v174 = vpack.c.b16 %v171, %v170
  %v175 = vpack.c.b16 %v173, %v172
  %178 = vmatprep.subr.bf16.mxu0 0
  %179 = vmatpush1.bf16.msra.mxu0 0
  %180 = vmatprep.subr.bf16.mxu0 0
  %181 = vmatpush1.bf16.msra.mxu0 0
  %182 = vmatprep.subr.bf16.mxu0 0
  %183 = vmatpush1.bf16.msra.mxu0 0
  %184 = vmatprep.subr.bf16.mxu0 0
  %185 = vmatpush1.bf16.msra.mxu0 0
  %186 = vmatprep.subr.bf16.mxu0 0
  %187 = vmatpush1.bf16.msra.mxu0 0
  %188 = vmatprep.subr.bf16.mxu0 0
  %189 = vmatpush1.bf16.msra.mxu0 0
  %190 = vmatprep.subr.bf16.mxu0 0
  %191 = vmatpush1.bf16.msra.mxu0 %v175
  %192 = vmatprep.subr.bf16.mxu0 0
  %193 = vmatpush1.bf16.msra.mxu0 %v174
  %194 = vmatprep.subr.bf16.mxu0 0
  %195 = vmatpush2.bf16.msra.mxu0 0
  %196 = vmatprep.subr.bf16.mxu0 0
  %197 = vmatpush2.bf16.msra.mxu0 0
  %198 = vmatprep.subr.bf16.mxu0 0
  %199 = vmatpush2.bf16.msra.mxu0 0
  %200 = vmatprep.subr.bf16.mxu0 0
  %201 = vmatpush2.bf16.msra.mxu0 0
  %202 = vmatprep.subr.bf16.mxu0 0
  %203 = vmatpush2.bf16.msra.mxu0 0
  %204 = vmatprep.subr.bf16.mxu0 0
  %205 = vmatpush2.bf16.msra.mxu0 0
  %206 = vmatprep.subr.bf16.mxu0 0
  %207 = vmatpush2.bf16.msra.mxu0 0
  %208 = vmatprep.subr.bf16.mxu0 0
  %209 = vmatpush2.bf16.msra.mxu0 0
  %210 = vmatprep.mubr.bf16.mxu0 0
  %211 = vmatmul.mubr.bf16.gmra.mxu0 %v114
  %v212 = vpop.f32.mrf.mxu0
  %v213 = vadd.f32 %v165, %v212
  %v214 = vpop.f32.mrf.mxu0
  %v215 = vpop.f32.mrf.mxu0
  %v216 = vadd.f32 %v165, %v215
  %v217 = vpop.f32.mrf.mxu0
  %218 = vdwg.mxu0
  %s219 = scalar_lea.vmem %s4, 64
  %v220 = vld [vmem:[%s219] sm:$0xf]
  %v221 = vld [vmem:[%s219 + $0x4] sm:$0xf]
  %v222 = vld [vmem:[%s219 + $0x8] sm:$0xf]
  %v223 = vld [vmem:[%s219 + $0xc] sm:$0xf]
  %v224 = vlaneseq
  %v225 = vshrl.u32 %v224, 7
  %v226 = vsub.s32 6, %v225
  %v227 = vrot.slane %v24, %v226
  %v232 = vunpack.c.l.b16 %v220
  %v233 = vunpack.c.l.b16 %v221
  %v234 = vunpack.c.l.b16 %v222
  %v235 = vunpack.c.l.b16 %v223
  %v236 = vpack.c.b16 %v233, %v232
  %v237 = vpack.c.b16 %v235, %v234
  %240 = vmatprep.subr.bf16.mxu0 0
  %241 = vmatpush1.bf16.msra.mxu0 0
  %242 = vmatprep.subr.bf16.mxu0 0
  %243 = vmatpush1.bf16.msra.mxu0 0
  %244 = vmatprep.subr.bf16.mxu0 0
  %245 = vmatpush1.bf16.msra.mxu0 0
  %246 = vmatprep.subr.bf16.mxu0 0
  %247 = vmatpush1.bf16.msra.mxu0 0
  %248 = vmatprep.subr.bf16.mxu0 0
  %249 = vmatpush1.bf16.msra.mxu0 0
  %250 = vmatprep.subr.bf16.mxu0 0
  %251 = vmatpush1.bf16.msra.mxu0 0
  %252 = vmatprep.subr.bf16.mxu0 0
  %253 = vmatpush1.bf16.msra.mxu0 %v237
  %254 = vmatprep.subr.bf16.mxu0 0
  %255 = vmatpush1.bf16.msra.mxu0 %v236
  %256 = vmatprep.subr.bf16.mxu0 0
  %257 = vmatpush2.bf16.msra.mxu0 0
  %258 = vmatprep.subr.bf16.mxu0 0
  %259 = vmatpush2.bf16.msra.mxu0 0
  %260 = vmatprep.subr.bf16.mxu0 0
  %261 = vmatpush2.bf16.msra.mxu0 0
  %262 = vmatprep.subr.bf16.mxu0 0
  %263 = vmatpush2.bf16.msra.mxu0 0
  %264 = vmatprep.subr.bf16.mxu0 0
  %265 = vmatpush2.bf16.msra.mxu0 0
  %266 = vmatprep.subr.bf16.mxu0 0
  %267 = vmatpush2.bf16.msra.mxu0 0
  %268 = vmatprep.subr.bf16.mxu0 0
  %269 = vmatpush2.bf16.msra.mxu0 0
  %270 = vmatprep.subr.bf16.mxu0 0
  %271 = vmatpush2.bf16.msra.mxu0 0
  %272 = vmatprep.mubr.bf16.mxu0 0
  %273 = vmatmul.mubr.bf16.gmra.mxu0 %v114
  %v274 = vpop.f32.mrf.mxu0
  %v275 = vadd.f32 %v227, %v274
  %v276 = vpop.f32.mrf.mxu0
  %v277 = vpop.f32.mrf.mxu0
  %v278 = vadd.f32 %v227, %v277
  %v279 = vpop.f32.mrf.mxu0
  %280 = vdwg.mxu0
  %v281 = vpack.c.bf16 %v154, %v151
  %v282 = vpack.c.bf16 %v216, %v213
  %vm283 = vcmask 130048
  %v285 = vsel %vm283, %v281, 0
  %v288 = vsel %vm283, %v282, 0
  %290 = vmatprep.subr.bf16.mxu0 0
  %291 = vmatpush1.bf16.xpose.msra.mxu0 0
  %292 = vmatprep.subr.bf16.mxu0 0
  %293 = vmatpush1.bf16.xpose.msra.mxu0 0
  %294 = vmatprep.subr.bf16.mxu0 0
  %295 = vmatpush1.bf16.xpose.msra.mxu0 0
  %296 = vmatprep.subr.bf16.mxu0 0
  %297 = vmatpush1.bf16.xpose.msra.mxu0 0
  %298 = vmatprep.subr.bf16.mxu0 0
  %299 = vmatpush1.bf16.xpose.msra.mxu0 0
  %300 = vmatprep.subr.bf16.mxu0 0
  %301 = vmatpush1.bf16.xpose.msra.mxu0 0
  %302 = vmatprep.subr.bf16.mxu0 0
  %303 = vmatpush1.bf16.xpose.msra.mxu0 0
  %304 = vmatprep.subr.bf16.mxu0 0
  %305 = vmatpush1.bf16.xpose.msra.mxu0 %v288
  %306 = vmatprep.subr.bf16.mxu0 0
  %307 = vmatpush2.bf16.xpose.msra.mxu0 0
  %308 = vmatprep.subr.bf16.mxu0 0
  %309 = vmatpush2.bf16.xpose.msra.mxu0 0
  %310 = vmatprep.subr.bf16.mxu0 0
  %311 = vmatpush2.bf16.xpose.msra.mxu0 0
  %312 = vmatprep.subr.bf16.mxu0 0
  %313 = vmatpush2.bf16.xpose.msra.mxu0 0
  %314 = vmatprep.subr.bf16.mxu0 0
  %315 = vmatpush2.bf16.xpose.msra.mxu0 0
  %316 = vmatprep.subr.bf16.mxu0 0
  %317 = vmatpush2.bf16.xpose.msra.mxu0 0
  %318 = vmatprep.subr.bf16.mxu0 0
  %319 = vmatpush2.bf16.xpose.msra.mxu0 0
  %320 = vmatprep.subr.bf16.mxu0 0
  %321 = vmatpush2.bf16.xpose.msra.mxu0 0
  %322 = vmatprep.mubr.bf16.mxu0 0
  %323 = vmatmul.mubr.bf16.gmra.mxu0 %v285
  %v324 = vpop.f32.mrf.mxu0
  %v325 = vadd.f32 %v90, %v324
  %v326 = vpop.f32.mrf.mxu0
  %v327 = vpop.f32.mrf.mxu0
  %v328 = vadd.f32 %v91, %v327
  %v329 = vpop.f32.mrf.mxu0
  %330 = vdwg.mxu0
  %v331 = vsel %vm283, %v325, -inf
  %332 = vmax.xlane.f32.xlu0 %v331
  %v333 = vpop.xlane.xlu0 %332
  %v334 = vsel %vm283, %v328, -inf
  %335 = vmax.xlane.f32.xlu0 %v334
  %v336 = vpop.xlane.xlu0 %335
  %v337 = vsub.f32 %v325, %v333
  %v338 = vsub.f32 %v328, %v336
  %v339 = vmul.f32 %v337, 1.442695
  %v340 = vpow.pop %v339
  %v341 = vmul.f32 %v338, 1.442695
  %v342 = vpow.pop %v341
  %v343 = vsel %vm283, %v340, 0.0
  %344 = vadd.xlane.f32.xlu0 %v343
  %v345 = vpop.xlane.xlu0 %344
  %v346 = vsel %vm283, %v342, 0.0
  %347 = vadd.xlane.f32.xlu0 %v346
  %v348 = vpop.xlane.xlu0 %347
  %v349 = vrcp.pop %v345
  %v350 = vmul.f32 %v340, %v349
  %v351 = vrcp.pop %v348
  %v352 = vmul.f32 %v342, %v351
  %v353 = vpack.c.bf16 %v352, %v350
  %v354 = vpack.c.bf16 %v278, %v275
  %v356 = vsel %vm283, %v353, 0
  %358 = vmatprep.subr.bf16.mxu0 0
  %359 = vmatpush1.bf16.msra.mxu0 0
  %360 = vmatprep.subr.bf16.mxu0 0
  %361 = vmatpush1.bf16.msra.mxu0 0
  %362 = vmatprep.subr.bf16.mxu0 0
  %363 = vmatpush1.bf16.msra.mxu0 0
  %364 = vmatprep.subr.bf16.mxu0 0
  %365 = vmatpush1.bf16.msra.mxu0 0
  %366 = vmatprep.subr.bf16.mxu0 0
  %367 = vmatpush1.bf16.msra.mxu0 0
  %368 = vmatprep.subr.bf16.mxu0 0
  %369 = vmatpush1.bf16.msra.mxu0 0
  %370 = vmatprep.subr.bf16.mxu0 0
  %371 = vmatpush1.bf16.msra.mxu0 0
  %372 = vmatprep.subr.bf16.mxu0 0
  %373 = vmatpush1.bf16.msra.mxu0 %v354
  %374 = vmatprep.subr.bf16.mxu0 0
  %375 = vmatpush2.bf16.msra.mxu0 0
  %376 = vmatprep.subr.bf16.mxu0 0
  %377 = vmatpush2.bf16.msra.mxu0 0
  %378 = vmatprep.subr.bf16.mxu0 0
  %379 = vmatpush2.bf16.msra.mxu0 0
  %380 = vmatprep.subr.bf16.mxu0 0
  %381 = vmatpush2.bf16.msra.mxu0 0
  %382 = vmatprep.subr.bf16.mxu0 0
  %383 = vmatpush2.bf16.msra.mxu0 0
  %384 = vmatprep.subr.bf16.mxu0 0
  %385 = vmatpush2.bf16.msra.mxu0 0
  %386 = vmatprep.subr.bf16.mxu0 0
  %387 = vmatpush2.bf16.msra.mxu0 0
  %388 = vmatprep.subr.bf16.mxu0 0
  %389 = vmatpush2.bf16.msra.mxu0 0
  %390 = vmatprep.mubr.bf16.mxu0 0
  %391 = vmatmul.mubr.bf16.gmra.mxu0 %v356
  %v392 = vpop.f32.mrf.mxu0
  %v393 = vadd.f32 0.0, %v392
  %v394 = vpop.f32.mrf.mxu0
  %v395 = vpop.f32.mrf.mxu0
  %v396 = vadd.f32 0.0, %v395
  %v397 = vpop.f32.mrf.mxu0
  %398 = vdwg.mxu0
  %v399 = vpack.c.bf16 %v396, %v393
  %s400 = scalar_lea.vmem %s4, 96
  %v401 = vld [vmem:[%s400] sm:$0xf]
  %v402 = vld [vmem:[%s400 + $0x4] sm:$0xf]
  %v403 = vld [vmem:[%s400 + $0x8] sm:$0xf]
  %v404 = vld [vmem:[%s400 + $0xc] sm:$0xf]
  %s405 = scalar_lea.vmem %s4, 16
  %v406 = vld [vmem:[%s405] sm:$0xf]
  %v407 = vld [vmem:[%s405 + $0x4] sm:$0xf]
  %v408 = vld [vmem:[%s405 + $0x8] sm:$0xf]
  %v409 = vld [vmem:[%s405 + $0xc] sm:$0xf]
  %v414 = vunpack.c.l.b16 %v406
  %v415 = vunpack.c.l.b16 %v407
  %v416 = vunpack.c.l.b16 %v408
  %v417 = vunpack.c.l.b16 %v409
  %v418 = vpack.c.b16 %v415, %v414
  %v419 = vpack.c.b16 %v417, %v416
  %423 = vrot.lane.b32.xlu0 %v100, 112
  %v424 = vpop.permute.xlu0 %423
  %426 = vmatprep.subr.bf16.mxu0 0
  %427 = vmatpush1.bf16.msra.mxu0 0
  %428 = vmatprep.subr.bf16.mxu0 0
  %429 = vmatpush1.bf16.msra.mxu0 0
  %430 = vmatprep.subr.bf16.mxu0 0
  %431 = vmatpush1.bf16.msra.mxu0 0
  %432 = vmatprep.subr.bf16.mxu0 0
  %433 = vmatpush1.bf16.msra.mxu0 0
  %434 = vmatprep.subr.bf16.mxu0 0
  %435 = vmatpush1.bf16.msra.mxu0 0
  %436 = vmatprep.subr.bf16.mxu0 0
  %437 = vmatpush1.bf16.msra.mxu0 0
  %438 = vmatprep.subr.bf16.mxu0 0
  %439 = vmatpush1.bf16.msra.mxu0 %v419
  %440 = vmatprep.subr.bf16.mxu0 0
  %441 = vmatpush1.bf16.msra.mxu0 %v418
  %442 = vmatprep.subr.bf16.mxu0 0
  %443 = vmatpush2.bf16.msra.mxu0 0
  %444 = vmatprep.subr.bf16.mxu0 0
  %445 = vmatpush2.bf16.msra.mxu0 0
  %446 = vmatprep.subr.bf16.mxu0 0
  %447 = vmatpush2.bf16.msra.mxu0 0
  %448 = vmatprep.subr.bf16.mxu0 0
  %449 = vmatpush2.bf16.msra.mxu0 0
  %450 = vmatprep.subr.bf16.mxu0 0
  %451 = vmatpush2.bf16.msra.mxu0 0
  %452 = vmatprep.subr.bf16.mxu0 0
  %453 = vmatpush2.bf16.msra.mxu0 0
  %454 = vmatprep.subr.bf16.mxu0 0
  %455 = vmatpush2.bf16.msra.mxu0 0
  %456 = vmatprep.subr.bf16.mxu0 0
  %457 = vmatpush2.bf16.msra.mxu0 0
  %458 = vmatprep.mubr.bf16.mxu0 0
  %459 = vmatmul.mubr.bf16.gmra.mxu0 %v114
  %v460 = vpop.f32.mrf.mxu0
  %v461 = vadd.f32 %v424, %v460
  %v462 = vpop.f32.mrf.mxu0
  %v463 = vpop.f32.mrf.mxu0
  %v464 = vadd.f32 %v424, %v463
  %v465 = vpop.f32.mrf.mxu0
  %466 = vdwg.mxu0
  %s467 = scalar_lea.vmem %s4, 48
  %v468 = vld [vmem:[%s467] sm:$0xf]
  %v469 = vld [vmem:[%s467 + $0x4] sm:$0xf]
  %v470 = vld [vmem:[%s467 + $0x8] sm:$0xf]
  %v471 = vld [vmem:[%s467 + $0xc] sm:$0xf]
  %v476 = vunpack.c.l.b16 %v468
  %v477 = vunpack.c.l.b16 %v469
  %v478 = vunpack.c.l.b16 %v470
  %v479 = vunpack.c.l.b16 %v471
  %v480 = vpack.c.b16 %v477, %v476
  %v481 = vpack.c.b16 %v479, %v478
  %485 = vrot.lane.b32.xlu0 %v165, 112
  %v486 = vpop.permute.xlu0 %485
  %488 = vmatprep.subr.bf16.mxu0 0
  %489 = vmatpush1.bf16.msra.mxu0 0
  %490 = vmatprep.subr.bf16.mxu0 0
  %491 = vmatpush1.bf16.msra.mxu0 0
  %492 = vmatprep.subr.bf16.mxu0 0
  %493 = vmatpush1.bf16.msra.mxu0 0
  %494 = vmatprep.subr.bf16.mxu0 0
  %495 = vmatpush1.bf16.msra.mxu0 0
  %496 = vmatprep.subr.bf16.mxu0 0
  %497 = vmatpush1.bf16.msra.mxu0 0
  %498 = vmatprep.subr.bf16.mxu0 0
  %499 = vmatpush1.bf16.msra.mxu0 0
  %500 = vmatprep.subr.bf16.mxu0 0
  %501 = vmatpush1.bf16.msra.mxu0 %v481
  %502 = vmatprep.subr.bf16.mxu0 0
  %503 = vmatpush1.bf16.msra.mxu0 %v480
  %504 = vmatprep.subr.bf16.mxu0 0
  %505 = vmatpush2.bf16.msra.mxu0 0
  %506 = vmatprep.subr.bf16.mxu0 0
  %507 = vmatpush2.bf16.msra.mxu0 0
  %508 = vmatprep.subr.bf16.mxu0 0
  %509 = vmatpush2.bf16.msra.mxu0 0
  %510 = vmatprep.subr.bf16.mxu0 0
  %511 = vmatpush2.bf16.msra.mxu0 0
  %512 = vmatprep.subr.bf16.mxu0 0
  %513 = vmatpush2.bf16.msra.mxu0 0
  %514 = vmatprep.subr.bf16.mxu0 0
  %515 = vmatpush2.bf16.msra.mxu0 0
  %516 = vmatprep.subr.bf16.mxu0 0
  %517 = vmatpush2.bf16.msra.mxu0 0
  %518 = vmatprep.subr.bf16.mxu0 0
  %519 = vmatpush2.bf16.msra.mxu0 0
  %520 = vmatprep.mubr.bf16.mxu0 0
  %521 = vmatmul.mubr.bf16.gmra.mxu0 %v114
  %v522 = vpop.f32.mrf.mxu0
  %v523 = vadd.f32 %v486, %v522
  %v524 = vpop.f32.mrf.mxu0
  %v525 = vpop.f32.mrf.mxu0
  %v526 = vadd.f32 %v486, %v525
  %v527 = vpop.f32.mrf.mxu0
  %528 = vdwg.mxu0
  %s529 = scalar_lea.vmem %s4, 80
  %v530 = vld [vmem:[%s529] sm:$0xf]
  %v531 = vld [vmem:[%s529 + $0x4] sm:$0xf]
  %v532 = vld [vmem:[%s529 + $0x8] sm:$0xf]
  %v533 = vld [vmem:[%s529 + $0xc] sm:$0xf]
  %v538 = vunpack.c.l.b16 %v530
  %v539 = vunpack.c.l.b16 %v531
  %v540 = vunpack.c.l.b16 %v532
  %v541 = vunpack.c.l.b16 %v533
  %v542 = vpack.c.b16 %v539, %v538
  %v543 = vpack.c.b16 %v541, %v540
  %547 = vrot.lane.b32.xlu0 %v227, 112
  %v548 = vpop.permute.xlu0 %547
  %550 = vmatprep.subr.bf16.mxu0 0
  %551 = vmatpush1.bf16.msra.mxu0 0
  %552 = vmatprep.subr.bf16.mxu0 0
  %553 = vmatpush1.bf16.msra.mxu0 0
  %554 = vmatprep.subr.bf16.mxu0 0
  %555 = vmatpush1.bf16.msra.mxu0 0
  %556 = vmatprep.subr.bf16.mxu0 0
  %557 = vmatpush1.bf16.msra.mxu0 0
  %558 = vmatprep.subr.bf16.mxu0 0
  %559 = vmatpush1.bf16.msra.mxu0 0
  %560 = vmatprep.subr.bf16.mxu0 0
  %561 = vmatpush1.bf16.msra.mxu0 0
  %562 = vmatprep.subr.bf16.mxu0 0
  %563 = vmatpush1.bf16.msra.mxu0 %v543
  %564 = vmatprep.subr.bf16.mxu0 0
  %565 = vmatpush1.bf16.msra.mxu0 %v542
  %566 = vmatprep.subr.bf16.mxu0 0
  %567 = vmatpush2.bf16.msra.mxu0 0
  %568 = vmatprep.subr.bf16.mxu0 0
  %569 = vmatpush2.bf16.msra.mxu0 0
  %570 = vmatprep.subr.bf16.mxu0 0
  %571 = vmatpush2.bf16.msra.mxu0 0
  %572 = vmatprep.subr.bf16.mxu0 0
  %573 = vmatpush2.bf16.msra.mxu0 0
  %574 = vmatprep.subr.bf16.mxu0 0
  %575 = vmatpush2.bf16.msra.mxu0 0
  %576 = vmatprep.subr.bf16.mxu0 0
  %577 = vmatpush2.bf16.msra.mxu0 0
  %578 = vmatprep.subr.bf16.mxu0 0
  %579 = vmatpush2.bf16.msra.mxu0 0
  %580 = vmatprep.subr.bf16.mxu0 0
  %581 = vmatpush2.bf16.msra.mxu0 0
  %582 = vmatprep.mubr.bf16.mxu0 0
  %583 = vmatmul.mubr.bf16.gmra.mxu0 %v114
  %v584 = vpop.f32.mrf.mxu0
  %v585 = vadd.f32 %v548, %v584
  %v586 = vpop.f32.mrf.mxu0
  %v587 = vpop.f32.mrf.mxu0
  %v588 = vadd.f32 %v548, %v587
  %v589 = vpop.f32.mrf.mxu0
  %590 = vdwg.mxu0
  %v591 = vpack.c.bf16 %v464, %v461
  %v592 = vpack.c.bf16 %v526, %v523
  %v594 = vsel %vm283, %v591, 0
  %v597 = vsel %vm283, %v592, 0
  %599 = vmatprep.subr.bf16.mxu0 0
  %600 = vmatpush1.bf16.xpose.msra.mxu0 0
  %601 = vmatprep.subr.bf16.mxu0 0
  %602 = vmatpush1.bf16.xpose.msra.mxu0 0
  %603 = vmatprep.subr.bf16.mxu0 0
  %604 = vmatpush1.bf16.xpose.msra.mxu0 0
  %605 = vmatprep.subr.bf16.mxu0 0
  %606 = vmatpush1.bf16.xpose.msra.mxu0 0
  %607 = vmatprep.subr.bf16.mxu0 0
  %608 = vmatpush1.bf16.xpose.msra.mxu0 0
  %609 = vmatprep.subr.bf16.mxu0 0
  %610 = vmatpush1.bf16.xpose.msra.mxu0 0
  %611 = vmatprep.subr.bf16.mxu0 0
  %612 = vmatpush1.bf16.xpose.msra.mxu0 0
  %613 = vmatprep.subr.bf16.mxu0 0
  %614 = vmatpush1.bf16.xpose.msra.mxu0 %v597
  %615 = vmatprep.subr.bf16.mxu0 0
  %616 = vmatpush2.bf16.xpose.msra.mxu0 0
  %617 = vmatprep.subr.bf16.mxu0 0
  %618 = vmatpush2.bf16.xpose.msra.mxu0 0
  %619 = vmatprep.subr.bf16.mxu0 0
  %620 = vmatpush2.bf16.xpose.msra.mxu0 0
  %621 = vmatprep.subr.bf16.mxu0 0
  %622 = vmatpush2.bf16.xpose.msra.mxu0 0
  %623 = vmatprep.subr.bf16.mxu0 0
  %624 = vmatpush2.bf16.xpose.msra.mxu0 0
  %625 = vmatprep.subr.bf16.mxu0 0
  %626 = vmatpush2.bf16.xpose.msra.mxu0 0
  %627 = vmatprep.subr.bf16.mxu0 0
  %628 = vmatpush2.bf16.xpose.msra.mxu0 0
  %629 = vmatprep.subr.bf16.mxu0 0
  %630 = vmatpush2.bf16.xpose.msra.mxu0 0
  %631 = vmatprep.mubr.bf16.mxu0 0
  %632 = vmatmul.mubr.bf16.gmra.mxu0 %v594
  %v633 = vpop.f32.mrf.mxu0
  %v634 = vadd.f32 %v90, %v633
  %v635 = vpop.f32.mrf.mxu0
  %v636 = vpop.f32.mrf.mxu0
  %v637 = vadd.f32 %v91, %v636
  %v638 = vpop.f32.mrf.mxu0
  %639 = vdwg.mxu0
  %v640 = vsel %vm283, %v634, -inf
  %641 = vmax.xlane.f32.xlu0 %v640
  %v642 = vpop.xlane.xlu0 %641
  %v643 = vsel %vm283, %v637, -inf
  %644 = vmax.xlane.f32.xlu0 %v643
  %v645 = vpop.xlane.xlu0 %644
  %v646 = vsub.f32 %v634, %v642
  %v647 = vsub.f32 %v637, %v645
  %v648 = vmul.f32 %v646, 1.442695
  %v649 = vpow.pop %v648
  %v650 = vmul.f32 %v647, 1.442695
  %v651 = vpow.pop %v650
  %v652 = vsel %vm283, %v649, 0.0
  %653 = vadd.xlane.f32.xlu0 %v652
  %v654 = vpop.xlane.xlu0 %653
  %v655 = vsel %vm283, %v651, 0.0
  %656 = vadd.xlane.f32.xlu0 %v655
  %v657 = vpop.xlane.xlu0 %656
  %v658 = vrcp.pop %v654
  %v659 = vmul.f32 %v649, %v658
  %v660 = vrcp.pop %v657
  %v661 = vmul.f32 %v651, %v660
  %v662 = vpack.c.bf16 %v661, %v659
  %v663 = vpack.c.bf16 %v588, %v585
  %v665 = vsel %vm283, %v662, 0
  %667 = vmatprep.subr.bf16.mxu0 0
  %668 = vmatpush1.bf16.msra.mxu0 0
  %669 = vmatprep.subr.bf16.mxu0 0
  %670 = vmatpush1.bf16.msra.mxu0 0
  %671 = vmatprep.subr.bf16.mxu0 0
  %672 = vmatpush1.bf16.msra.mxu0 0
  %673 = vmatprep.subr.bf16.mxu0 0
  %674 = vmatpush1.bf16.msra.mxu0 0
  %675 = vmatprep.subr.bf16.mxu0 0
  %676 = vmatpush1.bf16.msra.mxu0 0
  %677 = vmatprep.subr.bf16.mxu0 0
  %678 = vmatpush1.bf16.msra.mxu0 0
  %679 = vmatprep.subr.bf16.mxu0 0
  %680 = vmatpush1.bf16.msra.mxu0 0
  %681 = vmatprep.subr.bf16.mxu0 0
  %682 = vmatpush1.bf16.msra.mxu0 %v663
  %683 = vmatprep.subr.bf16.mxu0 0
  %684 = vmatpush2.bf16.msra.mxu0 0
  %685 = vmatprep.subr.bf16.mxu0 0
  %686 = vmatpush2.bf16.msra.mxu0 0
  %687 = vmatprep.subr.bf16.mxu0 0
  %688 = vmatpush2.bf16.msra.mxu0 0
  %689 = vmatprep.subr.bf16.mxu0 0
  %690 = vmatpush2.bf16.msra.mxu0 0
  %691 = vmatprep.subr.bf16.mxu0 0
  %692 = vmatpush2.bf16.msra.mxu0 0
  %693 = vmatprep.subr.bf16.mxu0 0
  %694 = vmatpush2.bf16.msra.mxu0 0
  %695 = vmatprep.subr.bf16.mxu0 0
  %696 = vmatpush2.bf16.msra.mxu0 0
  %697 = vmatprep.subr.bf16.mxu0 0
  %698 = vmatpush2.bf16.msra.mxu0 0
  %699 = vmatprep.mubr.bf16.mxu0 0
  %700 = vmatmul.mubr.bf16.gmra.mxu0 %v665
  %v701 = vpop.f32.mrf.mxu0
  %v702 = vadd.f32 0.0, %v701
  %v703 = vpop.f32.mrf.mxu0
  %v704 = vpop.f32.mrf.mxu0
  %v705 = vadd.f32 0.0, %v704
  %v706 = vpop.f32.mrf.mxu0
  %707 = vdwg.mxu0
  %v708 = vpack.c.bf16 %v705, %v702
  %s709 = scalar_lea.vmem %s4, 112
  %v710 = vld [vmem:[%s709] sm:$0xf]
  %v711 = vld [vmem:[%s709 + $0x4] sm:$0xf]
  %v712 = vld [vmem:[%s709 + $0x8] sm:$0xf]
  %v713 = vld [vmem:[%s709 + $0xc] sm:$0xf]
  %v718 = vunpack.c.l.b16 %v710
  %v719 = vunpack.c.l.b16 %v711
  %v720 = vunpack.c.l.b16 %v712
  %v721 = vunpack.c.l.b16 %v713
  %v722 = vpack.c.b16 %v719, %v718
  %v723 = vpack.c.b16 %v721, %v720
  %v725 = vsel %vm283, %v708, 0
  %v728 = vsel %vm283, %v722, 0
  %v731 = vsel %vm283, %v723, 0
  %733 = vmatprep.subr.bf16.mxu0 0
  %734 = vmatpush1.bf16.xpose.msra.mxu0 0
  %735 = vmatprep.subr.bf16.mxu0 0
  %736 = vmatpush1.bf16.xpose.msra.mxu0 0
  %737 = vmatprep.subr.bf16.mxu0 0
  %738 = vmatpush1.bf16.xpose.msra.mxu0 0
  %739 = vmatprep.subr.bf16.mxu0 0
  %740 = vmatpush1.bf16.xpose.msra.mxu0 0
  %741 = vmatprep.subr.bf16.mxu0 0
  %742 = vmatpush1.bf16.xpose.msra.mxu0 0
  %743 = vmatprep.subr.bf16.mxu0 0
  %744 = vmatpush1.bf16.xpose.msra.mxu0 0
  %745 = vmatprep.subr.bf16.mxu0 0
  %746 = vmatpush1.bf16.xpose.msra.mxu0 %v731
  %747 = vmatprep.subr.bf16.mxu0 0
  %748 = vmatpush1.bf16.xpose.msra.mxu0 %v728
  %749 = vmatprep.subr.bf16.mxu0 0
  %750 = vmatpush2.bf16.xpose.msra.mxu0 0
  %751 = vmatprep.subr.bf16.mxu0 0
  %752 = vmatpush2.bf16.xpose.msra.mxu0 0
  %753 = vmatprep.subr.bf16.mxu0 0
  %754 = vmatpush2.bf16.xpose.msra.mxu0 0
  %755 = vmatprep.subr.bf16.mxu0 0
  %756 = vmatpush2.bf16.xpose.msra.mxu0 0
  %757 = vmatprep.subr.bf16.mxu0 0
  %758 = vmatpush2.bf16.xpose.msra.mxu0 0
  %759 = vmatprep.subr.bf16.mxu0 0
  %760 = vmatpush2.bf16.xpose.msra.mxu0 0
  %761 = vmatprep.subr.bf16.mxu0 0
  %762 = vmatpush2.bf16.xpose.msra.mxu0 0
  %763 = vmatprep.subr.bf16.mxu0 0
  %764 = vmatpush2.bf16.xpose.msra.mxu0 0
  %765 = vmatprep.mubr.bf16.mxu0 0
  %766 = vmatmul.mubr.bf16.gmra.mxu0 %v725
  %v767 = vpop.f32.mrf.mxu0
  %v768 = vadd.f32 0.0, %v767
  %v769 = vpop.f32.mrf.mxu0
  %v770 = vpop.f32.mrf.mxu0
  %v771 = vadd.f32 0.0, %v770
  %v772 = vpop.f32.mrf.mxu0
  %773 = vdwg.mxu0
  %v778 = vunpack.c.l.b16 %v401
  %v779 = vunpack.c.l.b16 %v402
  %v780 = vunpack.c.l.b16 %v403
  %v781 = vunpack.c.l.b16 %v404
  %v782 = vpack.c.b16 %v779, %v778
  %v783 = vpack.c.b16 %v781, %v780
  %v785 = vsel %vm283, %v399, 0
  %v788 = vsel %vm283, %v782, 0
  %v791 = vsel %vm283, %v783, 0
  %793 = vmatprep.subr.bf16.mxu0 0
  %794 = vmatpush1.bf16.xpose.msra.mxu0 0
  %795 = vmatprep.subr.bf16.mxu0 0
  %796 = vmatpush1.bf16.xpose.msra.mxu0 0
  %797 = vmatprep.subr.bf16.mxu0 0
  %798 = vmatpush1.bf16.xpose.msra.mxu0 0
  %799 = vmatprep.subr.bf16.mxu0 0
  %800 = vmatpush1.bf16.xpose.msra.mxu0 0
  %801 = vmatprep.subr.bf16.mxu0 0
  %802 = vmatpush1.bf16.xpose.msra.mxu0 0
  %803 = vmatprep.subr.bf16.mxu0 0
  %804 = vmatpush1.bf16.xpose.msra.mxu0 0
  %805 = vmatprep.subr.bf16.mxu0 0
  %806 = vmatpush1.bf16.xpose.msra.mxu0 %v791
  %807 = vmatprep.subr.bf16.mxu0 0
  %808 = vmatpush1.bf16.xpose.msra.mxu0 %v788
  %809 = vmatprep.subr.bf16.mxu0 0
  %810 = vmatpush2.bf16.xpose.msra.mxu0 0
  %811 = vmatprep.subr.bf16.mxu0 0
  %812 = vmatpush2.bf16.xpose.msra.mxu0 0
  %813 = vmatprep.subr.bf16.mxu0 0
  %814 = vmatpush2.bf16.xpose.msra.mxu0 0
  %815 = vmatprep.subr.bf16.mxu0 0
  %816 = vmatpush2.bf16.xpose.msra.mxu0 0
  %817 = vmatprep.subr.bf16.mxu0 0
  %818 = vmatpush2.bf16.xpose.msra.mxu0 0
  %819 = vmatprep.subr.bf16.mxu0 0
  %820 = vmatpush2.bf16.xpose.msra.mxu0 0
  %821 = vmatprep.subr.bf16.mxu0 0
  %822 = vmatpush2.bf16.xpose.msra.mxu0 0
  %823 = vmatprep.subr.bf16.mxu0 0
  %824 = vmatpush2.bf16.xpose.msra.mxu0 0
  %825 = vmatprep.mubr.bf16.mxu0 0
  %826 = vmatmul.mubr.bf16.gmra.mxu0 %v785
  %v827 = vpop.f32.mrf.mxu0
  %v828 = vadd.f32 %v768, %v827
  %v829 = vpop.f32.mrf.mxu0
  %v830 = vpop.f32.mrf.mxu0
  %v831 = vadd.f32 %v771, %v830
  %v832 = vpop.f32.mrf.mxu0
  %833 = vdwg.mxu0
  %v834 = vlaneseq
  %v835 = vshrl.u32 %v834, 7
  %v836 = vsub.s32 7, %v835
  %v837 = vrot.slane %v24, %v836
  %v838 = vadd.f32 %v828, %v837
  %v839 = vadd.f32 %v831, %v837
  %v840 = vadd.f32 %v838, %v67
  %v841 = vadd.f32 %v839, %v68
  %v842 = vsel %vm29, %v840, 0.0
  %843 = vadd.xlane.f32.xlu0 %v842
  %v844 = vpop.xlane.xlu0 %843
  %v845 = vsel %vm29, %v841, 0.0
  %846 = vadd.xlane.f32.xlu0 %v845
  %v847 = vpop.xlane.xlu0 %846
  %v848 = vmul.f32 %v844, %v36
  %v849 = vmul.f32 %v847, %v36
  %v850 = vsub.f32 %v840, %v848
  %v851 = vsub.f32 %v841, %v849
  %v852 = vmul.f32 %v850, %v850
  %v853 = vmul.f32 %v851, %v851
  %v854 = vsel %vm29, %v852, 0.0
  %855 = vadd.xlane.f32.xlu0 %v854
  %v856 = vpop.xlane.xlu0 %855
  %v857 = vsel %vm29, %v853, 0.0
  %858 = vadd.xlane.f32.xlu0 %v857
  %v859 = vpop.xlane.xlu0 %858
  %v860 = vmul.f32 %v856, %v36
  %v861 = vmul.f32 %v859, %v36
  %v862 = vadd.f32 %v860, 1e-05
  %v863 = vadd.f32 %v861, 1e-05
  %v864 = vrsqrt.pop %v862
  %v865 = vrsqrt.pop %v863
  %v866 = vmul.f32 %v850, %v864
  %v867 = vmul.f32 %v851, %v865
  %v868 = vlaneseq
  %v869 = vshrl.u32 %v868, 7
  %v870 = vsub.s32 0, %v869
  %v871 = vrot.slane %v25, %v870
  %v872 = vmul.f32 %v866, %v871
  %v873 = vmul.f32 %v867, %v871
  %v874 = vlaneseq
  %v875 = vshrl.u32 %v874, 7
  %v876 = vsub.s32 1, %v875
  %v877 = vrot.slane %v25, %v876
  %v878 = vadd.f32 %v872, %v877
  %v879 = vadd.f32 %v873, %v877
  %v880 = vpack.c.bf16 %v879, %v878
  %v881 = vld [vmem:[%s5] sm:$0xf]
  %v882 = vld [vmem:[%s5 + $0x4] sm:$0xf]
  %v883 = vld [vmem:[%s5 + $0x8] sm:$0xf]
  %v884 = vld [vmem:[%s5 + $0xc] sm:$0xf]
  %v885 = vlaneseq
  %v886 = vshrl.u32 %v885, 7
  %v887 = vsub.s32 2, %v886
  %v888 = vrot.slane %v25, %v887
  %v893 = vunpack.c.l.b16 %v881
  %v894 = vunpack.c.l.b16 %v882
  %v895 = vunpack.c.l.b16 %v883
  %v896 = vunpack.c.l.b16 %v884
  %v897 = vpack.c.b16 %v894, %v893
  %v898 = vpack.c.b16 %v896, %v895
  %v902 = vsel %vm29, %v880, 0
  %904 = vmatprep.subr.bf16.mxu0 0
  %905 = vmatpush1.bf16.msra.mxu0 0
  %906 = vmatprep.subr.bf16.mxu0 0
  %907 = vmatpush1.bf16.msra.mxu0 0
  %908 = vmatprep.subr.bf16.mxu0 0
  %909 = vmatpush1.bf16.msra.mxu0 0
  %910 = vmatprep.subr.bf16.mxu0 0
  %911 = vmatpush1.bf16.msra.mxu0 0
  %912 = vmatprep.subr.bf16.mxu0 0
  %913 = vmatpush1.bf16.msra.mxu0 0
  %914 = vmatprep.subr.bf16.mxu0 0
  %915 = vmatpush1.bf16.msra.mxu0 0
  %916 = vmatprep.subr.bf16.mxu0 0
  %917 = vmatpush1.bf16.msra.mxu0 %v898
  %918 = vmatprep.subr.bf16.mxu0 0
  %919 = vmatpush1.bf16.msra.mxu0 %v897
  %920 = vmatprep.subr.bf16.mxu0 0
  %921 = vmatpush2.bf16.msra.mxu0 0
  %922 = vmatprep.subr.bf16.mxu0 0
  %923 = vmatpush2.bf16.msra.mxu0 0
  %924 = vmatprep.subr.bf16.mxu0 0
  %925 = vmatpush2.bf16.msra.mxu0 0
  %926 = vmatprep.subr.bf16.mxu0 0
  %927 = vmatpush2.bf16.msra.mxu0 0
  %928 = vmatprep.subr.bf16.mxu0 0
  %929 = vmatpush2.bf16.msra.mxu0 0
  %930 = vmatprep.subr.bf16.mxu0 0
  %931 = vmatpush2.bf16.msra.mxu0 0
  %932 = vmatprep.subr.bf16.mxu0 0
  %933 = vmatpush2.bf16.msra.mxu0 0
  %934 = vmatprep.subr.bf16.mxu0 0
  %935 = vmatpush2.bf16.msra.mxu0 0
  %936 = vmatprep.mubr.bf16.mxu0 0
  %937 = vmatmul.mubr.bf16.gmra.mxu0 %v902
  %v938 = vpop.f32.mrf.mxu0
  %v939 = vadd.f32 %v888, %v938
  %v940 = vpop.f32.mrf.mxu0
  %v941 = vpop.f32.mrf.mxu0
  %v942 = vadd.f32 %v888, %v941
  %v943 = vpop.f32.mrf.mxu0
  %944 = vdwg.mxu0
  %v945 = vmul.f32 %v939, 0.5
  %v946 = vmul.f32 %v942, 0.5
  %v947 = vmul.f32 %v939, 0.044715
  %v948 = vmul.f32 %v942, 0.044715
  %v949 = vmul.f32 %v947, %v939
  %v950 = vmul.f32 %v948, %v942
  %v951 = vmul.f32 %v949, %v939
  %v952 = vmul.f32 %v950, %v942
  %v953 = vadd.f32 %v939, %v951
  %v954 = vadd.f32 %v942, %v952
  %v955 = vmul.f32 %v953, 0.7978846
  %v956 = vmul.f32 %v954, 0.7978846
  %v957 = vtanh.pop %v955
  %v958 = vtanh.pop %v956
  %v959 = vadd.f32 %v957, 1.0
  %v960 = vadd.f32 %v958, 1.0
  %v961 = vmul.f32 %v945, %v959
  %v962 = vmul.f32 %v946, %v960
  %v963 = vpack.c.bf16 %v962, %v961
  %s964 = scalar_lea.vmem %s5, 16
  %v965 = vld [vmem:[%s964] sm:$0xf]
  %v966 = vld [vmem:[%s964 + $0x4] sm:$0xf]
  %v967 = vld [vmem:[%s964 + $0x8] sm:$0xf]
  %v968 = vld [vmem:[%s964 + $0xc] sm:$0xf]
  %v969 = vlaneseq
  %v970 = vshrl.u32 %v969, 7
  %v971 = vsub.s32 3, %v970
  %v972 = vrot.slane %v25, %v971
  %v977 = vunpack.c.l.b16 %v965
  %v978 = vunpack.c.l.b16 %v966
  %v979 = vunpack.c.l.b16 %v967
  %v980 = vunpack.c.l.b16 %v968
  %v981 = vpack.c.b16 %v978, %v977
  %v982 = vpack.c.b16 %v980, %v979
  %vm983 = vcmask 523264
  %v985 = vsel %vm983, %v963, 0
  %v988 = vsel %vm983, %v981, 0
  %v991 = vsel %vm983, %v982, 0
  %993 = vmatprep.subr.bf16.mxu0 0
  %994 = vmatpush1.bf16.xpose.msra.mxu0 0
  %995 = vmatprep.subr.bf16.mxu0 0
  %996 = vmatpush1.bf16.xpose.msra.mxu0 0
  %997 = vmatprep.subr.bf16.mxu0 0
  %998 = vmatpush1.bf16.xpose.msra.mxu0 0
  %999 = vmatprep.subr.bf16.mxu0 0
  %1000 = vmatpush1.bf16.xpose.msra.mxu0 0
  %1001 = vmatprep.subr.bf16.mxu0 0
  %1002 = vmatpush1.bf16.xpose.msra.mxu0 0
  %1003 = vmatprep.subr.bf16.mxu0 0
  %1004 = vmatpush1.bf16.xpose.msra.mxu0 0
  %1005 = vmatprep.subr.bf16.mxu0 0
  %1006 = vmatpush1.bf16.xpose.msra.mxu0 %v991
  %1007 = vmatprep.subr.bf16.mxu0 0
  %1008 = vmatpush1.bf16.xpose.msra.mxu0 %v988
  %1009 = vmatprep.subr.bf16.mxu0 0
  %1010 = vmatpush2.bf16.xpose.msra.mxu0 0
  %1011 = vmatprep.subr.bf16.mxu0 0
  %1012 = vmatpush2.bf16.xpose.msra.mxu0 0
  %1013 = vmatprep.subr.bf16.mxu0 0
  %1014 = vmatpush2.bf16.xpose.msra.mxu0 0
  %1015 = vmatprep.subr.bf16.mxu0 0
  %1016 = vmatpush2.bf16.xpose.msra.mxu0 0
  %1017 = vmatprep.subr.bf16.mxu0 0
  %1018 = vmatpush2.bf16.xpose.msra.mxu0 0
  %1019 = vmatprep.subr.bf16.mxu0 0
  %1020 = vmatpush2.bf16.xpose.msra.mxu0 0
  %1021 = vmatprep.subr.bf16.mxu0 0
  %1022 = vmatpush2.bf16.xpose.msra.mxu0 0
  %1023 = vmatprep.subr.bf16.mxu0 0
  %1024 = vmatpush2.bf16.xpose.msra.mxu0 0
  %1025 = vmatprep.mubr.bf16.mxu0 0
  %1026 = vmatmul.mubr.bf16.gmra.mxu0 %v985
  %v1027 = vpop.f32.mrf.mxu0
  %v1028 = vadd.f32 %v972, %v1027
  %v1029 = vpop.f32.mrf.mxu0
  %v1030 = vpop.f32.mrf.mxu0
  %v1031 = vadd.f32 %v972, %v1030
  %v1032 = vpop.f32.mrf.mxu0
  %1033 = vdwg.mxu0
  %v1034 = vadd.f32 %v1028, %v878
  %v1035 = vadd.f32 %v1031, %v879
  %v1036 = vsel %vm29, %v1034, 0.0
  %1037 = vadd.xlane.f32.xlu0 %v1036
  %v1038 = vpop.xlane.xlu0 %1037
  %v1039 = vsel %vm29, %v1035, 0.0
  %1040 = vadd.xlane.f32.xlu0 %v1039
  %v1041 = vpop.xlane.xlu0 %1040
  %v1042 = vmul.f32 %v1038, %v36
  %v1043 = vmul.f32 %v1041, %v36
  %v1044 = vsub.f32 %v1034, %v1042
  %v1045 = vsub.f32 %v1035, %v1043
  %v1046 = vmul.f32 %v1044, %v1044
  %v1047 = vmul.f32 %v1045, %v1045
  %v1048 = vsel %vm29, %v1046, 0.0
  %1049 = vadd.xlane.f32.xlu0 %v1048
  %v1050 = vpop.xlane.xlu0 %1049
  %v1051 = vsel %vm29, %v1047, 0.0
  %1052 = vadd.xlane.f32.xlu0 %v1051
  %v1053 = vpop.xlane.xlu0 %1052
  %v1054 = vmul.f32 %v1050, %v36
  %v1055 = vmul.f32 %v1053, %v36
  %v1056 = vadd.f32 %v1054, 1e-05
  %v1057 = vadd.f32 %v1055, 1e-05
  %v1058 = vrsqrt.pop %v1056
  %v1059 = vrsqrt.pop %v1057
  %v1060 = vmul.f32 %v1044, %v1058
  %v1061 = vmul.f32 %v1045, %v1059
  %v1062 = vlaneseq
  %v1063 = vshrl.u32 %v1062, 7
  %v1064 = vsub.s32 4, %v1063
  %v1065 = vrot.slane %v25, %v1064
  %v1066 = vmul.f32 %v1060, %v1065
  %v1067 = vmul.f32 %v1061, %v1065
  %v1068 = vlaneseq
  %v1069 = vshrl.u32 %v1068, 7
  %v1070 = vsub.s32 5, %v1069
  %v1071 = vrot.slane %v25, %v1070
  %v1072 = vadd.f32 %v1066, %v1071
  %v1073 = vadd.f32 %v1067, %v1071
  %v1074 = vpack.c.bf16 %v1073, %v1072
  %s1075 = scalar_lea.vmem %s4, 128
  %v1076 = vld [vmem:[%s1075] sm:$0xf]
  %v1077 = vld [vmem:[%s1075 + $0x4] sm:$0xf]
  %v1078 = vld [vmem:[%s1075 + $0x8] sm:$0xf]
  %v1079 = vld [vmem:[%s1075 + $0xc] sm:$0xf]
  %v1080 = vlaneseq
  %v1081 = vshrl.u32 %v1080, 7
  %v1082 = vsub.s32 6, %v1081
  %v1083 = vrot.slane %v25, %v1082
  %v1088 = vunpack.c.l.b16 %v1076
  %v1089 = vunpack.c.l.b16 %v1077
  %v1090 = vunpack.c.l.b16 %v1078
  %v1091 = vunpack.c.l.b16 %v1079
  %v1092 = vpack.c.b16 %v1089, %v1088
  %v1093 = vpack.c.b16 %v1091, %v1090
  %v1097 = vsel %vm29, %v1074, 0
  %1099 = vmatprep.subr.bf16.mxu0 0
  %1100 = vmatpush1.bf16.msra.mxu0 0
  %1101 = vmatprep.subr.bf16.mxu0 0
  %1102 = vmatpush1.bf16.msra.mxu0 0
  %1103 = vmatprep.subr.bf16.mxu0 0
  %1104 = vmatpush1.bf16.msra.mxu0 0
  %1105 = vmatprep.subr.bf16.mxu0 0
  %1106 = vmatpush1.bf16.msra.mxu0 0
  %1107 = vmatprep.subr.bf16.mxu0 0
  %1108 = vmatpush1.bf16.msra.mxu0 0
  %1109 = vmatprep.subr.bf16.mxu0 0
  %1110 = vmatpush1.bf16.msra.mxu0 0
  %1111 = vmatprep.subr.bf16.mxu0 0
  %1112 = vmatpush1.bf16.msra.mxu0 %v1093
  %1113 = vmatprep.subr.bf16.mxu0 0
  %1114 = vmatpush1.bf16.msra.mxu0 %v1092
  %1115 = vmatprep.subr.bf16.mxu0 0
  %1116 = vmatpush2.bf16.msra.mxu0 0
  %1117 = vmatprep.subr.bf16.mxu0 0
  %1118 = vmatpush2.bf16.msra.mxu0 0
  %1119 = vmatprep.subr.bf16.mxu0 0
  %1120 = vmatpush2.bf16.msra.mxu0 0
  %1121 = vmatprep.subr.bf16.mxu0 0
  %1122 = vmatpush2.bf16.msra.mxu0 0
  %1123 = vmatprep.subr.bf16.mxu0 0
  %1124 = vmatpush2.bf16.msra.mxu0 0
  %1125 = vmatprep.subr.bf16.mxu0 0
  %1126 = vmatpush2.bf16.msra.mxu0 0
  %1127 = vmatprep.subr.bf16.mxu0 0
  %1128 = vmatpush2.bf16.msra.mxu0 0
  %1129 = vmatprep.subr.bf16.mxu0 0
  %1130 = vmatpush2.bf16.msra.mxu0 0
  %1131 = vmatprep.mubr.bf16.mxu0 0
  %1132 = vmatmul.mubr.bf16.gmra.mxu0 %v1097
  %v1133 = vpop.f32.mrf.mxu0
  %v1134 = vadd.f32 %v1083, %v1133
  %v1135 = vpop.f32.mrf.mxu0
  %v1136 = vpop.f32.mrf.mxu0
  %v1137 = vadd.f32 %v1083, %v1136
  %v1138 = vpop.f32.mrf.mxu0
  %1139 = vdwg.mxu0
  %s1140 = scalar_lea.vmem %s4, 160
  %v1141 = vld [vmem:[%s1140] sm:$0xf]
  %v1142 = vld [vmem:[%s1140 + $0x4] sm:$0xf]
  %v1143 = vld [vmem:[%s1140 + $0x8] sm:$0xf]
  %v1144 = vld [vmem:[%s1140 + $0xc] sm:$0xf]
  %v1145 = vlaneseq
  %v1146 = vshrl.u32 %v1145, 7
  %v1147 = vsub.s32 7, %v1146
  %v1148 = vrot.slane %v25, %v1147
  %v1153 = vunpack.c.l.b16 %v1141
  %v1154 = vunpack.c.l.b16 %v1142
  %v1155 = vunpack.c.l.b16 %v1143
  %v1156 = vunpack.c.l.b16 %v1144
  %v1157 = vpack.c.b16 %v1154, %v1153
  %v1158 = vpack.c.b16 %v1156, %v1155
  %1161 = vmatprep.subr.bf16.mxu0 0
  %1162 = vmatpush1.bf16.msra.mxu0 0
  %1163 = vmatprep.subr.bf16.mxu0 0
  %1164 = vmatpush1.bf16.msra.mxu0 0
  %1165 = vmatprep.subr.bf16.mxu0 0
  %1166 = vmatpush1.bf16.msra.mxu0 0
  %1167 = vmatprep.subr.bf16.mxu0 0
  %1168 = vmatpush1.bf16.msra.mxu0 0
  %1169 = vmatprep.subr.bf16.mxu0 0
  %1170 = vmatpush1.bf16.msra.mxu0 0
  %1171 = vmatprep.subr.bf16.mxu0 0
  %1172 = vmatpush1.bf16.msra.mxu0 0
  %1173 = vmatprep.subr.bf16.mxu0 0
  %1174 = vmatpush1.bf16.msra.mxu0 %v1158
  %1175 = vmatprep.subr.bf16.mxu0 0
  %1176 = vmatpush1.bf16.msra.mxu0 %v1157
  %1177 = vmatprep.subr.bf16.mxu0 0
  %1178 = vmatpush2.bf16.msra.mxu0 0
  %1179 = vmatprep.subr.bf16.mxu0 0
  %1180 = vmatpush2.bf16.msra.mxu0 0
  %1181 = vmatprep.subr.bf16.mxu0 0
  %1182 = vmatpush2.bf16.msra.mxu0 0
  %1183 = vmatprep.subr.bf16.mxu0 0
  %1184 = vmatpush2.bf16.msra.mxu0 0
  %1185 = vmatprep.subr.bf16.mxu0 0
  %1186 = vmatpush2.bf16.msra.mxu0 0
  %1187 = vmatprep.subr.bf16.mxu0 0
  %1188 = vmatpush2.bf16.msra.mxu0 0
  %1189 = vmatprep.subr.bf16.mxu0 0
  %1190 = vmatpush2.bf16.msra.mxu0 0
  %1191 = vmatprep.subr.bf16.mxu0 0
  %1192 = vmatpush2.bf16.msra.mxu0 0
  %1193 = vmatprep.mubr.bf16.mxu0 0
  %1194 = vmatmul.mubr.bf16.gmra.mxu0 %v1097
  %v1195 = vpop.f32.mrf.mxu0
  %v1196 = vadd.f32 %v1148, %v1195
  %v1197 = vpop.f32.mrf.mxu0
  %v1198 = vpop.f32.mrf.mxu0
  %v1199 = vadd.f32 %v1148, %v1198
  %v1200 = vpop.f32.mrf.mxu0
  %1201 = vdwg.mxu0
  %s1202 = scalar_lea.vmem %s4, 192
  %v1203 = vld [vmem:[%s1202] sm:$0xf]
  %v1204 = vld [vmem:[%s1202 + $0x4] sm:$0xf]
  %v1205 = vld [vmem:[%s1202 + $0x8] sm:$0xf]
  %v1206 = vld [vmem:[%s1202 + $0xc] sm:$0xf]
  %v1207 = vlaneseq
  %v1208 = vshrl.u32 %v1207, 7
  %v1209 = vsub.s32 0, %v1208
  %v1210 = vrot.slane %v26, %v1209
  %v1215 = vunpack.c.l.b16 %v1203
  %v1216 = vunpack.c.l.b16 %v1204
  %v1217 = vunpack.c.l.b16 %v1205
  %v1218 = vunpack.c.l.b16 %v1206
  %v1219 = vpack.c.b16 %v1216, %v1215
  %v1220 = vpack.c.b16 %v1218, %v1217
  %1223 = vmatprep.subr.bf16.mxu0 0
  %1224 = vmatpush1.bf16.msra.mxu0 0
  %1225 = vmatprep.subr.bf16.mxu0 0
  %1226 = vmatpush1.bf16.msra.mxu0 0
  %1227 = vmatprep.subr.bf16.mxu0 0
  %1228 = vmatpush1.bf16.msra.mxu0 0
  %1229 = vmatprep.subr.bf16.mxu0 0
  %1230 = vmatpush1.bf16.msra.mxu0 0
  %1231 = vmatprep.subr.bf16.mxu0 0
  %1232 = vmatpush1.bf16.msra.mxu0 0
  %1233 = vmatprep.subr.bf16.mxu0 0
  %1234 = vmatpush1.bf16.msra.mxu0 0
  %1235 = vmatprep.subr.bf16.mxu0 0
  %1236 = vmatpush1.bf16.msra.mxu0 %v1220
  %1237 = vmatprep.subr.bf16.mxu0 0
  %1238 = vmatpush1.bf16.msra.mxu0 %v1219
  %1239 = vmatprep.subr.bf16.mxu0 0
  %1240 = vmatpush2.bf16.msra.mxu0 0
  %1241 = vmatprep.subr.bf16.mxu0 0
  %1242 = vmatpush2.bf16.msra.mxu0 0
  %1243 = vmatprep.subr.bf16.mxu0 0
  %1244 = vmatpush2.bf16.msra.mxu0 0
  %1245 = vmatprep.subr.bf16.mxu0 0
  %1246 = vmatpush2.bf16.msra.mxu0 0
  %1247 = vmatprep.subr.bf16.mxu0 0
  %1248 = vmatpush2.bf16.msra.mxu0 0
  %1249 = vmatprep.subr.bf16.mxu0 0
  %1250 = vmatpush2.bf16.msra.mxu0 0
  %1251 = vmatprep.subr.bf16.mxu0 0
  %1252 = vmatpush2.bf16.msra.mxu0 0
  %1253 = vmatprep.subr.bf16.mxu0 0
  %1254 = vmatpush2.bf16.msra.mxu0 0
  %1255 = vmatprep.mubr.bf16.mxu0 0
  %1256 = vmatmul.mubr.bf16.gmra.mxu0 %v1097
  %v1257 = vpop.f32.mrf.mxu0
  %v1258 = vadd.f32 %v1210, %v1257
  %v1259 = vpop.f32.mrf.mxu0
  %v1260 = vpop.f32.mrf.mxu0
  %v1261 = vadd.f32 %v1210, %v1260
  %v1262 = vpop.f32.mrf.mxu0
  %1263 = vdwg.mxu0
  %v1264 = vpack.c.bf16 %v1137, %v1134
  %v1265 = vpack.c.bf16 %v1199, %v1196
  %v1267 = vsel %vm283, %v1264, 0
  %v1270 = vsel %vm283, %v1265, 0
  %1272 = vmatprep.subr.bf16.mxu0 0
  %1273 = vmatpush1.bf16.xpose.msra.mxu0 0
  %1274 = vmatprep.subr.bf16.mxu0 0
  %1275 = vmatpush1.bf16.xpose.msra.mxu0 0
  %1276 = vmatprep.subr.bf16.mxu0 0
  %1277 = vmatpush1.bf16.xpose.msra.mxu0 0
  %1278 = vmatprep.subr.bf16.mxu0 0
  %1279 = vmatpush1.bf16.xpose.msra.mxu0 0
  %1280 = vmatprep.subr.bf16.mxu0 0
  %1281 = vmatpush1.bf16.xpose.msra.mxu0 0
  %1282 = vmatprep.subr.bf16.mxu0 0
  %1283 = vmatpush1.bf16.xpose.msra.mxu0 0
  %1284 = vmatprep.subr.bf16.mxu0 0
  %1285 = vmatpush1.bf16.xpose.msra.mxu0 0
  %1286 = vmatprep.subr.bf16.mxu0 0
  %1287 = vmatpush1.bf16.xpose.msra.mxu0 %v1270
  %1288 = vmatprep.subr.bf16.mxu0 0
  %1289 = vmatpush2.bf16.xpose.msra.mxu0 0
  %1290 = vmatprep.subr.bf16.mxu0 0
  %1291 = vmatpush2.bf16.xpose.msra.mxu0 0
  %1292 = vmatprep.subr.bf16.mxu0 0
  %1293 = vmatpush2.bf16.xpose.msra.mxu0 0
  %1294 = vmatprep.subr.bf16.mxu0 0
  %1295 = vmatpush2.bf16.xpose.msra.mxu0 0
  %1296 = vmatprep.subr.bf16.mxu0 0
  %1297 = vmatpush2.bf16.xpose.msra.mxu0 0
  %1298 = vmatprep.subr.bf16.mxu0 0
  %1299 = vmatpush2.bf16.xpose.msra.mxu0 0
  %1300 = vmatprep.subr.bf16.mxu0 0
  %1301 = vmatpush2.bf16.xpose.msra.mxu0 0
  %1302 = vmatprep.subr.bf16.mxu0 0
  %1303 = vmatpush2.bf16.xpose.msra.mxu0 0
  %1304 = vmatprep.mubr.bf16.mxu0 0
  %1305 = vmatmul.mubr.bf16.gmra.mxu0 %v1267
  %v1306 = vpop.f32.mrf.mxu0
  %v1307 = vadd.f32 %v90, %v1306
  %v1308 = vpop.f32.mrf.mxu0
  %v1309 = vpop.f32.mrf.mxu0
  %v1310 = vadd.f32 %v91, %v1309
  %v1311 = vpop.f32.mrf.mxu0
  %1312 = vdwg.mxu0
  %v1313 = vsel %vm283, %v1307, -inf
  %1314 = vmax.xlane.f32.xlu0 %v1313
  %v1315 = vpop.xlane.xlu0 %1314
  %v1316 = vsel %vm283, %v1310, -inf
  %1317 = vmax.xlane.f32.xlu0 %v1316
  %v1318 = vpop.xlane.xlu0 %1317
  %v1319 = vsub.f32 %v1307, %v1315
  %v1320 = vsub.f32 %v1310, %v1318
  %v1321 = vmul.f32 %v1319, 1.442695
  %v1322 = vpow.pop %v1321
  %v1323 = vmul.f32 %v1320, 1.442695
  %v1324 = vpow.pop %v1323
  %v1325 = vsel %vm283, %v1322, 0.0
  %1326 = vadd.xlane.f32.xlu0 %v1325
  %v1327 = vpop.xlane.xlu0 %1326
  %v1328 = vsel %vm283, %v1324, 0.0
  %1329 = vadd.xlane.f32.xlu0 %v1328
  %v1330 = vpop.xlane.xlu0 %1329
  %v1331 = vrcp.pop %v1327
  %v1332 = vmul.f32 %v1322, %v1331
  %v1333 = vrcp.pop %v1330
  %v1334 = vmul.f32 %v1324, %v1333
  %v1335 = vpack.c.bf16 %v1334, %v1332
  %v1336 = vpack.c.bf16 %v1261, %v1258
  %v1338 = vsel %vm283, %v1335, 0
  %1340 = vmatprep.subr.bf16.mxu0 0
  %1341 = vmatpush1.bf16.msra.mxu0 0
  %1342 = vmatprep.subr.bf16.mxu0 0
  %1343 = vmatpush1.bf16.msra.mxu0 0
  %1344 = vmatprep.subr.bf16.mxu0 0
  %1345 = vmatpush1.bf16.msra.mxu0 0
  %1346 = vmatprep.subr.bf16.mxu0 0
  %1347 = vmatpush1.bf16.msra.mxu0 0
  %1348 = vmatprep.subr.bf16.mxu0 0
  %1349 = vmatpush1.bf16.msra.mxu0 0
  %1350 = vmatprep.subr.bf16.mxu0 0
  %1351 = vmatpush1.bf16.msra.mxu0 0
  %1352 = vmatprep.subr.bf16.mxu0 0
  %1353 = vmatpush1.bf16.msra.mxu0 0
  %1354 = vmatprep.subr.bf16.mxu0 0
  %1355 = vmatpush1.bf16.msra.mxu0 %v1336
  %1356 = vmatprep.subr.bf16.mxu0 0
  %1357 = vmatpush2.bf16.msra.mxu0 0
  %1358 = vmatprep.subr.bf16.mxu0 0
  %1359 = vmatpush2.bf16.msra.mxu0 0
  %1360 = vmatprep.subr.bf16.mxu0 0
  %1361 = vmatpush2.bf16.msra.mxu0 0
  %1362 = vmatprep.subr.bf16.mxu0 0
  %1363 = vmatpush2.bf16.msra.mxu0 0
  %1364 = vmatprep.subr.bf16.mxu0 0
  %1365 = vmatpush2.bf16.msra.mxu0 0
  %1366 = vmatprep.subr.bf16.mxu0 0
  %1367 = vmatpush2.bf16.msra.mxu0 0
  %1368 = vmatprep.subr.bf16.mxu0 0
  %1369 = vmatpush2.bf16.msra.mxu0 0
  %1370 = vmatprep.subr.bf16.mxu0 0
  %1371 = vmatpush2.bf16.msra.mxu0 0
  %1372 = vmatprep.mubr.bf16.mxu0 0
  %1373 = vmatmul.mubr.bf16.gmra.mxu0 %v1338
  %v1374 = vpop.f32.mrf.mxu0
  %v1375 = vadd.f32 0.0, %v1374
  %v1376 = vpop.f32.mrf.mxu0
  %v1377 = vpop.f32.mrf.mxu0
  %v1378 = vadd.f32 0.0, %v1377
  %v1379 = vpop.f32.mrf.mxu0
  %1380 = vdwg.mxu0
  %v1381 = vpack.c.bf16 %v1378, %v1375
  %s1382 = scalar_lea.vmem %s4, 224
  %v1383 = vld [vmem:[%s1382] sm:$0xf]
  %v1384 = vld [vmem:[%s1382 + $0x4] sm:$0xf]
  %v1385 = vld [vmem:[%s1382 + $0x8] sm:$0xf]
  %v1386 = vld [vmem:[%s1382 + $0xc] sm:$0xf]
  %s1387 = scalar_lea.vmem %s4, 144
  %v1388 = vld [vmem:[%s1387] sm:$0xf]
  %v1389 = vld [vmem:[%s1387 + $0x4] sm:$0xf]
  %v1390 = vld [vmem:[%s1387 + $0x8] sm:$0xf]
  %v1391 = vld [vmem:[%s1387 + $0xc] sm:$0xf]
  %v1396 = vunpack.c.l.b16 %v1388
  %v1397 = vunpack.c.l.b16 %v1389
  %v1398 = vunpack.c.l.b16 %v1390
  %v1399 = vunpack.c.l.b16 %v1391
  %v1400 = vpack.c.b16 %v1397, %v1396
  %v1401 = vpack.c.b16 %v1399, %v1398
  %1405 = vrot.lane.b32.xlu0 %v1083, 112
  %v1406 = vpop.permute.xlu0 %1405
  %1408 = vmatprep.subr.bf16.mxu0 0
  %1409 = vmatpush1.bf16.msra.mxu0 0
  %1410 = vmatprep.subr.bf16.mxu0 0
  %1411 = vmatpush1.bf16.msra.mxu0 0
  %1412 = vmatprep.subr.bf16.mxu0 0
  %1413 = vmatpush1.bf16.msra.mxu0 0
  %1414 = vmatprep.subr.bf16.mxu0 0
  %1415 = vmatpush1.bf16.msra.mxu0 0
  %1416 = vmatprep.subr.bf16.mxu0 0
  %1417 = vmatpush1.bf16.msra.mxu0 0
  %1418 = vmatprep.subr.bf16.mxu0 0
  %1419 = vmatpush1.bf16.msra.mxu0 0
  %1420 = vmatprep.subr.bf16.mxu0 0
  %1421 = vmatpush1.bf16.msra.mxu0 %v1401
  %1422 = vmatprep.subr.bf16.mxu0 0
  %1423 = vmatpush1.bf16.msra.mxu0 %v1400
  %1424 = vmatprep.subr.bf16.mxu0 0
  %1425 = vmatpush2.bf16.msra.mxu0 0
  %1426 = vmatprep.subr.bf16.mxu0 0
  %1427 = vmatpush2.bf16.msra.mxu0 0
  %1428 = vmatprep.subr.bf16.mxu0 0
  %1429 = vmatpush2.bf16.msra.mxu0 0
  %1430 = vmatprep.subr.bf16.mxu0 0
  %1431 = vmatpush2.bf16.msra.mxu0 0
  %1432 = vmatprep.subr.bf16.mxu0 0
  %1433 = vmatpush2.bf16.msra.mxu0 0
  %1434 = vmatprep.subr.bf16.mxu0 0
  %1435 = vmatpush2.bf16.msra.mxu0 0
  %1436 = vmatprep.subr.bf16.mxu0 0
  %1437 = vmatpush2.bf16.msra.mxu0 0
  %1438 = vmatprep.subr.bf16.mxu0 0
  %1439 = vmatpush2.bf16.msra.mxu0 0
  %1440 = vmatprep.mubr.bf16.mxu0 0
  %1441 = vmatmul.mubr.bf16.gmra.mxu0 %v1097
  %v1442 = vpop.f32.mrf.mxu0
  %v1443 = vadd.f32 %v1406, %v1442
  %v1444 = vpop.f32.mrf.mxu0
  %v1445 = vpop.f32.mrf.mxu0
  %v1446 = vadd.f32 %v1406, %v1445
  %v1447 = vpop.f32.mrf.mxu0
  %1448 = vdwg.mxu0
  %s1449 = scalar_lea.vmem %s4, 176
  %v1450 = vld [vmem:[%s1449] sm:$0xf]
  %v1451 = vld [vmem:[%s1449 + $0x4] sm:$0xf]
  %v1452 = vld [vmem:[%s1449 + $0x8] sm:$0xf]
  %v1453 = vld [vmem:[%s1449 + $0xc] sm:$0xf]
  %v1458 = vunpack.c.l.b16 %v1450
  %v1459 = vunpack.c.l.b16 %v1451
  %v1460 = vunpack.c.l.b16 %v1452
  %v1461 = vunpack.c.l.b16 %v1453
  %v1462 = vpack.c.b16 %v1459, %v1458
  %v1463 = vpack.c.b16 %v1461, %v1460
  %1467 = vrot.lane.b32.xlu0 %v1148, 112
  %v1468 = vpop.permute.xlu0 %1467
  %1470 = vmatprep.subr.bf16.mxu0 0
  %1471 = vmatpush1.bf16.msra.mxu0 0
  %1472 = vmatprep.subr.bf16.mxu0 0
  %1473 = vmatpush1.bf16.msra.mxu0 0
  %1474 = vmatprep.subr.bf16.mxu0 0
  %1475 = vmatpush1.bf16.msra.mxu0 0
  %1476 = vmatprep.subr.bf16.mxu0 0
  %1477 = vmatpush1.bf16.msra.mxu0 0
  %1478 = vmatprep.subr.bf16.mxu0 0
  %1479 = vmatpush1.bf16.msra.mxu0 0
  %1480 = vmatprep.subr.bf16.mxu0 0
  %1481 = vmatpush1.bf16.msra.mxu0 0
  %1482 = vmatprep.subr.bf16.mxu0 0
  %1483 = vmatpush1.bf16.msra.mxu0 %v1463
  %1484 = vmatprep.subr.bf16.mxu0 0
  %1485 = vmatpush1.bf16.msra.mxu0 %v1462
  %1486 = vmatprep.subr.bf16.mxu0 0
  %1487 = vmatpush2.bf16.msra.mxu0 0
  %1488 = vmatprep.subr.bf16.mxu0 0
  %1489 = vmatpush2.bf16.msra.mxu0 0
  %1490 = vmatprep.subr.bf16.mxu0 0
  %1491 = vmatpush2.bf16.msra.mxu0 0
  %1492 = vmatprep.subr.bf16.mxu0 0
  %1493 = vmatpush2.bf16.msra.mxu0 0
  %1494 = vmatprep.subr.bf16.mxu0 0
  %1495 = vmatpush2.bf16.msra.mxu0 0
  %1496 = vmatprep.subr.bf16.mxu0 0
  %1497 = vmatpush2.bf16.msra.mxu0 0
  %1498 = vmatprep.subr.bf16.mxu0 0
  %1499 = vmatpush2.bf16.msra.mxu0 0
  %1500 = vmatprep.subr.bf16.mxu0 0
  %1501 = vmatpush2.bf16.msra.mxu0 0
  %1502 = vmatprep.mubr.bf16.mxu0 0
  %1503 = vmatmul.mubr.bf16.gmra.mxu0 %v1097
  %v1504 = vpop.f32.mrf.mxu0
  %v1505 = vadd.f32 %v1468, %v1504
  %v1506 = vpop.f32.mrf.mxu0
  %v1507 = vpop.f32.mrf.mxu0
  %v1508 = vadd.f32 %v1468, %v1507
  %v1509 = vpop.f32.mrf.mxu0
  %1510 = vdwg.mxu0
  %s1511 = scalar_lea.vmem %s4, 208
  %v1512 = vld [vmem:[%s1511] sm:$0xf]
  %v1513 = vld [vmem:[%s1511 + $0x4] sm:$0xf]
  %v1514 = vld [vmem:[%s1511 + $0x8] sm:$0xf]
  %v1515 = vld [vmem:[%s1511 + $0xc] sm:$0xf]
  %v1520 = vunpack.c.l.b16 %v1512
  %v1521 = vunpack.c.l.b16 %v1513
  %v1522 = vunpack.c.l.b16 %v1514
  %v1523 = vunpack.c.l.b16 %v1515
  %v1524 = vpack.c.b16 %v1521, %v1520
  %v1525 = vpack.c.b16 %v1523, %v1522
  %1529 = vrot.lane.b32.xlu0 %v1210, 112
  %v1530 = vpop.permute.xlu0 %1529
  %1532 = vmatprep.subr.bf16.mxu0 0
  %1533 = vmatpush1.bf16.msra.mxu0 0
  %1534 = vmatprep.subr.bf16.mxu0 0
  %1535 = vmatpush1.bf16.msra.mxu0 0
  %1536 = vmatprep.subr.bf16.mxu0 0
  %1537 = vmatpush1.bf16.msra.mxu0 0
  %1538 = vmatprep.subr.bf16.mxu0 0
  %1539 = vmatpush1.bf16.msra.mxu0 0
  %1540 = vmatprep.subr.bf16.mxu0 0
  %1541 = vmatpush1.bf16.msra.mxu0 0
  %1542 = vmatprep.subr.bf16.mxu0 0
  %1543 = vmatpush1.bf16.msra.mxu0 0
  %1544 = vmatprep.subr.bf16.mxu0 0
  %1545 = vmatpush1.bf16.msra.mxu0 %v1525
  %1546 = vmatprep.subr.bf16.mxu0 0
  %1547 = vmatpush1.bf16.msra.mxu0 %v1524
  %1548 = vmatprep.subr.bf16.mxu0 0
  %1549 = vmatpush2.bf16.msra.mxu0 0
  %1550 = vmatprep.subr.bf16.mxu0 0
  %1551 = vmatpush2.bf16.msra.mxu0 0
  %1552 = vmatprep.subr.bf16.mxu0 0
  %1553 = vmatpush2.bf16.msra.mxu0 0
  %1554 = vmatprep.subr.bf16.mxu0 0
  %1555 = vmatpush2.bf16.msra.mxu0 0
  %1556 = vmatprep.subr.bf16.mxu0 0
  %1557 = vmatpush2.bf16.msra.mxu0 0
  %1558 = vmatprep.subr.bf16.mxu0 0
  %1559 = vmatpush2.bf16.msra.mxu0 0
  %1560 = vmatprep.subr.bf16.mxu0 0
  %1561 = vmatpush2.bf16.msra.mxu0 0
  %1562 = vmatprep.subr.bf16.mxu0 0
  %1563 = vmatpush2.bf16.msra.mxu0 0
  %1564 = vmatprep.mubr.bf16.mxu0 0
  %1565 = vmatmul.mubr.bf16.gmra.mxu0 %v1097
  %v1566 = vpop.f32.mrf.mxu0
  %v1567 = vadd.f32 %v1530, %v1566
  %v1568 = vpop.f32.mrf.mxu0
  %v1569 = vpop.f32.mrf.mxu0
  %v1570 = vadd.f32 %v1530, %v1569
  %v1571 = vpop.f32.mrf.mxu0
  %1572 = vdwg.mxu0
  %v1573 = vpack.c.bf16 %v1446, %v1443
  %v1574 = vpack.c.bf16 %v1508, %v1505
  %v1576 = vsel %vm283, %v1573, 0
  %v1579 = vsel %vm283, %v1574, 0
  %1581 = vmatprep.subr.bf16.mxu0 0
  %1582 = vmatpush1.bf16.xpose.msra.mxu0 0
  %1583 = vmatprep.subr.bf16.mxu0 0
  %1584 = vmatpush1.bf16.xpose.msra.mxu0 0
  %1585 = vmatprep.subr.bf16.mxu0 0
  %1586 = vmatpush1.bf16.xpose.msra.mxu0 0
  %1587 = vmatprep.subr.bf16.mxu0 0
  %1588 = vmatpush1.bf16.xpose.msra.mxu0 0
  %1589 = vmatprep.subr.bf16.mxu0 0
  %1590 = vmatpush1.bf16.xpose.msra.mxu0 0
  %1591 = vmatprep.subr.bf16.mxu0 0
  %1592 = vmatpush1.bf16.xpose.msra.mxu0 0
  %1593 = vmatprep.subr.bf16.mxu0 0
  %1594 = vmatpush1.bf16.xpose.msra.mxu0 0
  %1595 = vmatprep.subr.bf16.mxu0 0
  %1596 = vmatpush1.bf16.xpose.msra.mxu0 %v1579
  %1597 = vmatprep.subr.bf16.mxu0 0
  %1598 = vmatpush2.bf16.xpose.msra.mxu0 0
  %1599 = vmatprep.subr.bf16.mxu0 0
  %1600 = vmatpush2.bf16.xpose.msra.mxu0 0
  %1601 = vmatprep.subr.bf16.mxu0 0
  %1602 = vmatpush2.bf16.xpose.msra.mxu0 0
  %1603 = vmatprep.subr.bf16.mxu0 0
  %1604 = vmatpush2.bf16.xpose.msra.mxu0 0
  %1605 = vmatprep.subr.bf16.mxu0 0
  %1606 = vmatpush2.bf16.xpose.msra.mxu0 0
  %1607 = vmatprep.subr.bf16.mxu0 0
  %1608 = vmatpush2.bf16.xpose.msra.mxu0 0
  %1609 = vmatprep.subr.bf16.mxu0 0
  %1610 = vmatpush2.bf16.xpose.msra.mxu0 0
  %1611 = vmatprep.subr.bf16.mxu0 0
  %1612 = vmatpush2.bf16.xpose.msra.mxu0 0
  %1613 = vmatprep.mubr.bf16.mxu0 0
  %1614 = vmatmul.mubr.bf16.gmra.mxu0 %v1576
  %v1615 = vpop.f32.mrf.mxu0
  %v1616 = vadd.f32 %v90, %v1615
  %v1617 = vpop.f32.mrf.mxu0
  %v1618 = vpop.f32.mrf.mxu0
  %v1619 = vadd.f32 %v91, %v1618
  %v1620 = vpop.f32.mrf.mxu0
  %1621 = vdwg.mxu0
  %v1622 = vsel %vm283, %v1616, -inf
  %1623 = vmax.xlane.f32.xlu0 %v1622
  %v1624 = vpop.xlane.xlu0 %1623
  %v1625 = vsel %vm283, %v1619, -inf
  %1626 = vmax.xlane.f32.xlu0 %v1625
  %v1627 = vpop.xlane.xlu0 %1626
  %v1628 = vsub.f32 %v1616, %v1624
  %v1629 = vsub.f32 %v1619, %v1627
  %v1630 = vmul.f32 %v1628, 1.442695
  %v1631 = vpow.pop %v1630
  %v1632 = vmul.f32 %v1629, 1.442695
  %v1633 = vpow.pop %v1632
  %v1634 = vsel %vm283, %v1631, 0.0
  %1635 = vadd.xlane.f32.xlu0 %v1634
  %v1636 = vpop.xlane.xlu0 %1635
  %v1637 = vsel %vm283, %v1633, 0.0
  %1638 = vadd.xlane.f32.xlu0 %v1637
  %v1639 = vpop.xlane.xlu0 %1638
  %v1640 = vrcp.pop %v1636
  %v1641 = vmul.f32 %v1631, %v1640
  %v1642 = vrcp.pop %v1639
  %v1643 = vmul.f32 %v1633, %v1642
  %v1644 = vpack.c.bf16 %v1643, %v1641
  %v1645 = vpack.c.bf16 %v1570, %v1567
  %v1647 = vsel %vm283, %v1644, 0
  %1649 = vmatprep.subr.bf16.mxu0 0
  %1650 = vmatpush1.bf16.msra.mxu0 0
  %1651 = vmatprep.subr.bf16.mxu0 0
  %1652 = vmatpush1.bf16.msra.mxu0 0
  %1653 = vmatprep.subr.bf16.mxu0 0
  %1654 = vmatpush1.bf16.msra.mxu0 0
  %1655 = vmatprep.subr.bf16.mxu0 0
  %1656 = vmatpush1.bf16.msra.mxu0 0
  %1657 = vmatprep.subr.bf16.mxu0 0
  %1658 = vmatpush1.bf16.msra.mxu0 0
  %1659 = vmatprep.subr.bf16.mxu0 0
  %1660 = vmatpush1.bf16.msra.mxu0 0
  %1661 = vmatprep.subr.bf16.mxu0 0
  %1662 = vmatpush1.bf16.msra.mxu0 0
  %1663 = vmatprep.subr.bf16.mxu0 0
  %1664 = vmatpush1.bf16.msra.mxu0 %v1645
  %1665 = vmatprep.subr.bf16.mxu0 0
  %1666 = vmatpush2.bf16.msra.mxu0 0
  %1667 = vmatprep.subr.bf16.mxu0 0
  %1668 = vmatpush2.bf16.msra.mxu0 0
  %1669 = vmatprep.subr.bf16.mxu0 0
  %1670 = vmatpush2.bf16.msra.mxu0 0
  %1671 = vmatprep.subr.bf16.mxu0 0
  %1672 = vmatpush2.bf16.msra.mxu0 0
  %1673 = vmatprep.subr.bf16.mxu0 0
  %1674 = vmatpush2.bf16.msra.mxu0 0
  %1675 = vmatprep.subr.bf16.mxu0 0
  %1676 = vmatpush2.bf16.msra.mxu0 0
  %1677 = vmatprep.subr.bf16.mxu0 0
  %1678 = vmatpush2.bf16.msra.mxu0 0
  %1679 = vmatprep.subr.bf16.mxu0 0
  %1680 = vmatpush2.bf16.msra.mxu0 0
  %1681 = vmatprep.mubr.bf16.mxu0 0
  %1682 = vmatmul.mubr.bf16.gmra.mxu0 %v1647
  %v1683 = vpop.f32.mrf.mxu0
  %v1684 = vadd.f32 0.0, %v1683
  %v1685 = vpop.f32.mrf.mxu0
  %v1686 = vpop.f32.mrf.mxu0
  %v1687 = vadd.f32 0.0, %v1686
  %v1688 = vpop.f32.mrf.mxu0
  %1689 = vdwg.mxu0
  %v1690 = vpack.c.bf16 %v1687, %v1684
  %s1691 = scalar_lea.vmem %s4, 240
  %v1692 = vld [vmem:[%s1691] sm:$0xf]
  %v1693 = vld [vmem:[%s1691 + $0x4] sm:$0xf]
  %v1694 = vld [vmem:[%s1691 + $0x8] sm:$0xf]
  %v1695 = vld [vmem:[%s1691 + $0xc] sm:$0xf]
  %v1700 = vunpack.c.l.b16 %v1692
  %v1701 = vunpack.c.l.b16 %v1693
  %v1702 = vunpack.c.l.b16 %v1694
  %v1703 = vunpack.c.l.b16 %v1695
  %v1704 = vpack.c.b16 %v1701, %v1700
  %v1705 = vpack.c.b16 %v1703, %v1702
  %v1707 = vsel %vm283, %v1690, 0
  %v1710 = vsel %vm283, %v1704, 0
  %v1713 = vsel %vm283, %v1705, 0
  %1715 = vmatprep.subr.bf16.mxu0 0
  %1716 = vmatpush1.bf16.xpose.msra.mxu0 0
  %1717 = vmatprep.subr.bf16.mxu0 0
  %1718 = vmatpush1.bf16.xpose.msra.mxu0 0
  %1719 = vmatprep.subr.bf16.mxu0 0
  %1720 = vmatpush1.bf16.xpose.msra.mxu0 0
  %1721 = vmatprep.subr.bf16.mxu0 0
  %1722 = vmatpush1.bf16.xpose.msra.mxu0 0
  %1723 = vmatprep.subr.bf16.mxu0 0
  %1724 = vmatpush1.bf16.xpose.msra.mxu0 0
  %1725 = vmatprep.subr.bf16.mxu0 0
  %1726 = vmatpush1.bf16.xpose.msra.mxu0 0
  %1727 = vmatprep.subr.bf16.mxu0 0
  %1728 = vmatpush1.bf16.xpose.msra.mxu0 %v1713
  %1729 = vmatprep.subr.bf16.mxu0 0
  %1730 = vmatpush1.bf16.xpose.msra.mxu0 %v1710
  %1731 = vmatprep.subr.bf16.mxu0 0
  %1732 = vmatpush2.bf16.xpose.msra.mxu0 0
  %1733 = vmatprep.subr.bf16.mxu0 0
  %1734 = vmatpush2.bf16.xpose.msra.mxu0 0
  %1735 = vmatprep.subr.bf16.mxu0 0
  %1736 = vmatpush2.bf16.xpose.msra.mxu0 0
  %1737 = vmatprep.subr.bf16.mxu0 0
  %1738 = vmatpush2.bf16.xpose.msra.mxu0 0
  %1739 = vmatprep.subr.bf16.mxu0 0
  %1740 = vmatpush2.bf16.xpose.msra.mxu0 0
  %1741 = vmatprep.subr.bf16.mxu0 0
  %1742 = vmatpush2.bf16.xpose.msra.mxu0 0
  %1743 = vmatprep.subr.bf16.mxu0 0
  %1744 = vmatpush2.bf16.xpose.msra.mxu0 0
  %1745 = vmatprep.subr.bf16.mxu0 0
  %1746 = vmatpush2.bf16.xpose.msra.mxu0 0
  %1747 = vmatprep.mubr.bf16.mxu0 0
  %1748 = vmatmul.mubr.bf16.gmra.mxu0 %v1707
  %v1749 = vpop.f32.mrf.mxu0
  %v1750 = vadd.f32 0.0, %v1749
  %v1751 = vpop.f32.mrf.mxu0
  %v1752 = vpop.f32.mrf.mxu0
  %v1753 = vadd.f32 0.0, %v1752
  %v1754 = vpop.f32.mrf.mxu0
  %1755 = vdwg.mxu0
  %v1760 = vunpack.c.l.b16 %v1383
  %v1761 = vunpack.c.l.b16 %v1384
  %v1762 = vunpack.c.l.b16 %v1385
  %v1763 = vunpack.c.l.b16 %v1386
  %v1764 = vpack.c.b16 %v1761, %v1760
  %v1765 = vpack.c.b16 %v1763, %v1762
  %v1767 = vsel %vm283, %v1381, 0
  %v1770 = vsel %vm283, %v1764, 0
  %v1773 = vsel %vm283, %v1765, 0
  %1775 = vmatprep.subr.bf16.mxu0 0
  %1776 = vmatpush1.bf16.xpose.msra.mxu0 0
  %1777 = vmatprep.subr.bf16.mxu0 0
  %1778 = vmatpush1.bf16.xpose.msra.mxu0 0
  %1779 = vmatprep.subr.bf16.mxu0 0
  %1780 = vmatpush1.bf16.xpose.msra.mxu0 0
  %1781 = vmatprep.subr.bf16.mxu0 0
  %1782 = vmatpush1.bf16.xpose.msra.mxu0 0
  %1783 = vmatprep.subr.bf16.mxu0 0
  %1784 = vmatpush1.bf16.xpose.msra.mxu0 0
  %1785 = vmatprep.subr.bf16.mxu0 0
  %1786 = vmatpush1.bf16.xpose.msra.mxu0 0
  %1787 = vmatprep.subr.bf16.mxu0 0
  %1788 = vmatpush1.bf16.xpose.msra.mxu0 %v1773
  %1789 = vmatprep.subr.bf16.mxu0 0
  %1790 = vmatpush1.bf16.xpose.msra.mxu0 %v1770
  %1791 = vmatprep.subr.bf16.mxu0 0
  %1792 = vmatpush2.bf16.xpose.msra.mxu0 0
  %1793 = vmatprep.subr.bf16.mxu0 0
  %1794 = vmatpush2.bf16.xpose.msra.mxu0 0
  %1795 = vmatprep.subr.bf16.mxu0 0
  %1796 = vmatpush2.bf16.xpose.msra.mxu0 0
  %1797 = vmatprep.subr.bf16.mxu0 0
  %1798 = vmatpush2.bf16.xpose.msra.mxu0 0
  %1799 = vmatprep.subr.bf16.mxu0 0
  %1800 = vmatpush2.bf16.xpose.msra.mxu0 0
  %1801 = vmatprep.subr.bf16.mxu0 0
  %1802 = vmatpush2.bf16.xpose.msra.mxu0 0
  %1803 = vmatprep.subr.bf16.mxu0 0
  %1804 = vmatpush2.bf16.xpose.msra.mxu0 0
  %1805 = vmatprep.subr.bf16.mxu0 0
  %1806 = vmatpush2.bf16.xpose.msra.mxu0 0
  %1807 = vmatprep.mubr.bf16.mxu0 0
  %1808 = vmatmul.mubr.bf16.gmra.mxu0 %v1767
  %v1809 = vpop.f32.mrf.mxu0
  %v1810 = vadd.f32 %v1750, %v1809
  %v1811 = vpop.f32.mrf.mxu0
  %v1812 = vpop.f32.mrf.mxu0
  %v1813 = vadd.f32 %v1753, %v1812
  %v1814 = vpop.f32.mrf.mxu0
  %1815 = vdwg.mxu0
  %v1816 = vlaneseq
  %v1817 = vshrl.u32 %v1816, 7
  %v1818 = vsub.s32 1, %v1817
  %v1819 = vrot.slane %v26, %v1818
  %v1820 = vadd.f32 %v1810, %v1819
  %v1821 = vadd.f32 %v1813, %v1819
  %v1822 = vadd.f32 %v1820, %v1072
  %v1823 = vadd.f32 %v1821, %v1073
  %v1824 = vsel %vm29, %v1822, 0.0
  %1825 = vadd.xlane.f32.xlu0 %v1824
  %v1826 = vpop.xlane.xlu0 %1825
  %v1827 = vsel %vm29, %v1823, 0.0
  %1828 = vadd.xlane.f32.xlu0 %v1827
  %v1829 = vpop.xlane.xlu0 %1828
  %v1830 = vmul.f32 %v1826, %v36
  %v1831 = vmul.f32 %v1829, %v36
  %v1832 = vsub.f32 %v1822, %v1830
  %v1833 = vsub.f32 %v1823, %v1831
  %v1834 = vmul.f32 %v1832, %v1832
  %v1835 = vmul.f32 %v1833, %v1833
  %v1836 = vsel %vm29, %v1834, 0.0
  %1837 = vadd.xlane.f32.xlu0 %v1836
  %v1838 = vpop.xlane.xlu0 %1837
  %v1839 = vsel %vm29, %v1835, 0.0
  %1840 = vadd.xlane.f32.xlu0 %v1839
  %v1841 = vpop.xlane.xlu0 %1840
  %v1842 = vmul.f32 %v1838, %v36
  %v1843 = vmul.f32 %v1841, %v36
  %v1844 = vadd.f32 %v1842, 1e-05
  %v1845 = vadd.f32 %v1843, 1e-05
  %v1846 = vrsqrt.pop %v1844
  %v1847 = vrsqrt.pop %v1845
  %v1848 = vmul.f32 %v1832, %v1846
  %v1849 = vmul.f32 %v1833, %v1847
  %v1850 = vlaneseq
  %v1851 = vshrl.u32 %v1850, 7
  %v1852 = vsub.s32 2, %v1851
  %v1853 = vrot.slane %v26, %v1852
  %v1854 = vmul.f32 %v1848, %v1853
  %v1855 = vmul.f32 %v1849, %v1853
  %v1856 = vlaneseq
  %v1857 = vshrl.u32 %v1856, 7
  %v1858 = vsub.s32 3, %v1857
  %v1859 = vrot.slane %v26, %v1858
  %v1860 = vadd.f32 %v1854, %v1859
  %v1861 = vadd.f32 %v1855, %v1859
  %v1862 = vpack.c.bf16 %v1861, %v1860
  %s1863 = scalar_lea.vmem %s5, 32
  %v1864 = vld [vmem:[%s1863] sm:$0xf]
  %v1865 = vld [vmem:[%s1863 + $0x4] sm:$0xf]
  %v1866 = vld [vmem:[%s1863 + $0x8] sm:$0xf]
  %v1867 = vld [vmem:[%s1863 + $0xc] sm:$0xf]
  %v1868 = vlaneseq
  %v1869 = vshrl.u32 %v1868, 7
  %v1870 = vsub.s32 4, %v1869
  %v1871 = vrot.slane %v26, %v1870
  %v1876 = vunpack.c.l.b16 %v1864
  %v1877 = vunpack.c.l.b16 %v1865
  %v1878 = vunpack.c.l.b16 %v1866
  %v1879 = vunpack.c.l.b16 %v1867
  %v1880 = vpack.c.b16 %v1877, %v1876
  %v1881 = vpack.c.b16 %v1879, %v1878
  %v1885 = vsel %vm29, %v1862, 0
  %1887 = vmatprep.subr.bf16.mxu0 0
  %1888 = vmatpush1.bf16.msra.mxu0 0
  %1889 = vmatprep.subr.bf16.mxu0 0
  %1890 = vmatpush1.bf16.msra.mxu0 0
  %1891 = vmatprep.subr.bf16.mxu0 0
  %1892 = vmatpush1.bf16.msra.mxu0 0
  %1893 = vmatprep.subr.bf16.mxu0 0
  %1894 = vmatpush1.bf16.msra.mxu0 0
  %1895 = vmatprep.subr.bf16.mxu0 0
  %1896 = vmatpush1.bf16.msra.mxu0 0
  %1897 = vmatprep.subr.bf16.mxu0 0
  %1898 = vmatpush1.bf16.msra.mxu0 0
  %1899 = vmatprep.subr.bf16.mxu0 0
  %1900 = vmatpush1.bf16.msra.mxu0 %v1881
  %1901 = vmatprep.subr.bf16.mxu0 0
  %1902 = vmatpush1.bf16.msra.mxu0 %v1880
  %1903 = vmatprep.subr.bf16.mxu0 0
  %1904 = vmatpush2.bf16.msra.mxu0 0
  %1905 = vmatprep.subr.bf16.mxu0 0
  %1906 = vmatpush2.bf16.msra.mxu0 0
  %1907 = vmatprep.subr.bf16.mxu0 0
  %1908 = vmatpush2.bf16.msra.mxu0 0
  %1909 = vmatprep.subr.bf16.mxu0 0
  %1910 = vmatpush2.bf16.msra.mxu0 0
  %1911 = vmatprep.subr.bf16.mxu0 0
  %1912 = vmatpush2.bf16.msra.mxu0 0
  %1913 = vmatprep.subr.bf16.mxu0 0
  %1914 = vmatpush2.bf16.msra.mxu0 0
  %1915 = vmatprep.subr.bf16.mxu0 0
  %1916 = vmatpush2.bf16.msra.mxu0 0
  %1917 = vmatprep.subr.bf16.mxu0 0
  %1918 = vmatpush2.bf16.msra.mxu0 0
  %1919 = vmatprep.mubr.bf16.mxu0 0
  %1920 = vmatmul.mubr.bf16.gmra.mxu0 %v1885
  %v1921 = vpop.f32.mrf.mxu0
  %v1922 = vadd.f32 %v1871, %v1921
  %v1923 = vpop.f32.mrf.mxu0
  %v1924 = vpop.f32.mrf.mxu0
  %v1925 = vadd.f32 %v1871, %v1924
  %v1926 = vpop.f32.mrf.mxu0
  %1927 = vdwg.mxu0
  %v1928 = vmul.f32 %v1922, 0.5
  %v1929 = vmul.f32 %v1925, 0.5
  %v1930 = vmul.f32 %v1922, 0.044715
  %v1931 = vmul.f32 %v1925, 0.044715
  %v1932 = vmul.f32 %v1930, %v1922
  %v1933 = vmul.f32 %v1931, %v1925
  %v1934 = vmul.f32 %v1932, %v1922
  %v1935 = vmul.f32 %v1933, %v1925
  %v1936 = vadd.f32 %v1922, %v1934
  %v1937 = vadd.f32 %v1925, %v1935
  %v1938 = vmul.f32 %v1936, 0.7978846
  %v1939 = vmul.f32 %v1937, 0.7978846
  %v1940 = vtanh.pop %v1938
  %v1941 = vtanh.pop %v1939
  %v1942 = vadd.f32 %v1940, 1.0
  %v1943 = vadd.f32 %v1941, 1.0
  %v1944 = vmul.f32 %v1928, %v1942
  %v1945 = vmul.f32 %v1929, %v1943
  %v1946 = vpack.c.bf16 %v1945, %v1944
  %s1947 = scalar_lea.vmem %s5, 48
  %v1948 = vld [vmem:[%s1947] sm:$0xf]
  %v1949 = vld [vmem:[%s1947 + $0x4] sm:$0xf]
  %v1950 = vld [vmem:[%s1947 + $0x8] sm:$0xf]
  %v1951 = vld [vmem:[%s1947 + $0xc] sm:$0xf]
  %v1952 = vlaneseq
  %v1953 = vshrl.u32 %v1952, 7
  %v1954 = vsub.s32 5, %v1953
  %v1955 = vrot.slane %v26, %v1954
  %v1960 = vunpack.c.l.b16 %v1948
  %v1961 = vunpack.c.l.b16 %v1949
  %v1962 = vunpack.c.l.b16 %v1950
  %v1963 = vunpack.c.l.b16 %v1951
  %v1964 = vpack.c.b16 %v1961, %v1960
  %v1965 = vpack.c.b16 %v1963, %v1962
  %v1967 = vsel %vm983, %v1946, 0
  %v1970 = vsel %vm983, %v1964, 0
  %v1973 = vsel %vm983, %v1965, 0
  %1975 = vmatprep.subr.bf16.mxu0 0
  %1976 = vmatpush1.bf16.xpose.msra.mxu0 0
  %1977 = vmatprep.subr.bf16.mxu0 0
  %1978 = vmatpush1.bf16.xpose.msra.mxu0 0
  %1979 = vmatprep.subr.bf16.mxu0 0
  %1980 = vmatpush1.bf16.xpose.msra.mxu0 0
  %1981 = vmatprep.subr.bf16.mxu0 0
  %1982 = vmatpush1.bf16.xpose.msra.mxu0 0
  %1983 = vmatprep.subr.bf16.mxu0 0
  %1984 = vmatpush1.bf16.xpose.msra.mxu0 0
  %1985 = vmatprep.subr.bf16.mxu0 0
  %1986 = vmatpush1.bf16.xpose.msra.mxu0 0
  %1987 = vmatprep.subr.bf16.mxu0 0
  %1988 = vmatpush1.bf16.xpose.msra.mxu0 %v1973
  %1989 = vmatprep.subr.bf16.mxu0 0
  %1990 = vmatpush1.bf16.xpose.msra.mxu0 %v1970
  %1991 = vmatprep.subr.bf16.mxu0 0
  %1992 = vmatpush2.bf16.xpose.msra.mxu0 0
  %1993 = vmatprep.subr.bf16.mxu0 0
  %1994 = vmatpush2.bf16.xpose.msra.mxu0 0
  %1995 = vmatprep.subr.bf16.mxu0 0
  %1996 = vmatpush2.bf16.xpose.msra.mxu0 0
  %1997 = vmatprep.subr.bf16.mxu0 0
  %1998 = vmatpush2.bf16.xpose.msra.mxu0 0
  %1999 = vmatprep.subr.bf16.mxu0 0
  %2000 = vmatpush2.bf16.xpose.msra.mxu0 0
  %2001 = vmatprep.subr.bf16.mxu0 0
  %2002 = vmatpush2.bf16.xpose.msra.mxu0 0
  %2003 = vmatprep.subr.bf16.mxu0 0
  %2004 = vmatpush2.bf16.xpose.msra.mxu0 0
  %2005 = vmatprep.subr.bf16.mxu0 0
  %2006 = vmatpush2.bf16.xpose.msra.mxu0 0
  %2007 = vmatprep.mubr.bf16.mxu0 0
  %2008 = vmatmul.mubr.bf16.gmra.mxu0 %v1967
  %v2009 = vpop.f32.mrf.mxu0
  %v2010 = vadd.f32 %v1955, %v2009
  %v2011 = vpop.f32.mrf.mxu0
  %v2012 = vpop.f32.mrf.mxu0
  %v2013 = vadd.f32 %v1955, %v2012
  %v2014 = vpop.f32.mrf.mxu0
  %2015 = vdwg.mxu0
  %v2016 = vadd.f32 %v2010, %v1860
  %v2017 = vadd.f32 %v2013, %v1861
  %v2018 = vsel %vm29, %v2016, 0.0
  %2019 = vadd.xlane.f32.xlu0 %v2018
  %v2020 = vpop.xlane.xlu0 %2019
  %v2021 = vsel %vm29, %v2017, 0.0
  %2022 = vadd.xlane.f32.xlu0 %v2021
  %v2023 = vpop.xlane.xlu0 %2022
  %v2024 = vmul.f32 %v2020, %v36
  %v2025 = vmul.f32 %v2023, %v36
  %v2026 = vsub.f32 %v2016, %v2024
  %v2027 = vsub.f32 %v2017, %v2025
  %v2028 = vmul.f32 %v2026, %v2026
  %v2029 = vmul.f32 %v2027, %v2027
  %v2030 = vsel %vm29, %v2028, 0.0
  %2031 = vadd.xlane.f32.xlu0 %v2030
  %v2032 = vpop.xlane.xlu0 %2031
  %v2033 = vsel %vm29, %v2029, 0.0
  %2034 = vadd.xlane.f32.xlu0 %v2033
  %v2035 = vpop.xlane.xlu0 %2034
  %v2036 = vmul.f32 %v2032, %v36
  %v2037 = vmul.f32 %v2035, %v36
  %v2038 = vadd.f32 %v2036, 1e-05
  %v2039 = vadd.f32 %v2037, 1e-05
  %v2040 = vrsqrt.pop %v2038
  %v2041 = vrsqrt.pop %v2039
  %v2042 = vmul.f32 %v2026, %v2040
  %v2043 = vmul.f32 %v2027, %v2041
  %v2044 = vlaneseq
  %v2045 = vshrl.u32 %v2044, 7
  %v2046 = vsub.s32 6, %v2045
  %v2047 = vrot.slane %v26, %v2046
  %v2048 = vmul.f32 %v2042, %v2047
  %v2049 = vmul.f32 %v2043, %v2047
  %v2050 = vlaneseq
  %v2051 = vshrl.u32 %v2050, 7
  %v2052 = vsub.s32 7, %v2051
  %v2053 = vrot.slane %v26, %v2052
  %v2054 = vadd.f32 %v2048, %v2053
  %v2055 = vadd.f32 %v2049, %v2053
  %v2057 = vrot.slane %v2055, 7
  %vm2059 = vcmask 1040384
  %v2060 = vsel %vm2059, %v2054, %v2057
  %v2061 = vlaneseq
  %v2062 = vshrl.u32 %v2061, 7
  %v2063 = vsub.s32 2, %v2062
  %v2064 = vrot.slane %v24, %v2063
  %v2065 = vmul.f32 %v2060, %v2064
  %vm2066 = vcmask 254976
  %v2067 = vsel %vm2066, %v2065, 0.0
  %2068 = vadd.xlane.f32.xlu0 %v2067
  %v2069 = vpop.xlane.xlu0 %2068
  %v2070 = vlaneseq
  %v2071 = vshrl.u32 %v2070, 7
  %v2072 = vsub.s32 3, %v2071
  %v2073 = vrot.slane %v24, %v2072
  %v2074 = vadd.f32 %v2069, %v2073
  %2076 = vset.pattern.permute.xlu0 0
  %2077 = vperm.xlu0 %2076, %v2074
  %v2078 = vpop.permute.xlu0 %2077
  %2080 = vst [vmem:[%s6] sm:$0x3] %v2078
  // Predicated region
  $region26: #{codebert_clone_detector_forward.1} parent=0 // pred_check
    _
  $region27: #{codebert_clone_detector_forward.1} parent=0 // pred_check_branch
    %2082 = sbr.rel (0) target = $region29
  $region28: #{codebert_clone_detector_forward.1} parent=0 // pred_region
    _
  $region29: #{codebert_clone_detector_forward.1} parent=0 // pred_fallthru
    _
  // Predicated region
  $region30: #{codebert_clone_detector_forward.1} parent=0 // pred_check
    _
  $region31: #{codebert_clone_detector_forward.1} parent=0 // pred_check_branch
    %2084 = sbr.rel (0) target = $region33
  $region32: #{codebert_clone_detector_forward.1} parent=0 // pred_region
    _
  $region33: #{codebert_clone_detector_forward.1} parent=0 // pred_fallthru
    _

</llo_original>
